<compile_context>
chip_gen: v7x
topology: tpu7x:2x2x1
jax: 0.10.0
libtpu: 0.0.40
codegen_flags: <defaults>
</compile_context>

<pallas_src>
import jax
import jax.numpy as jnp
from jax import lax
from jax.experimental import pallas as pl
from jax.experimental.pallas import tpu as pltpu

N_SAMPLES = 2 ** 14
N_FRAMES = N_SAMPLES // 256        # 64 frames per batch element
KSIZE = 7
PAD = 3
LEAK = 0.2


def _cdiv(a, b):
    return -(-a // b)


def _rup(a, b):
    return _cdiv(a, b) * b


def _leaky(x):
    return jnp.where(x > 0, x, LEAK * x)


def _pick_pack(dim):
    """Frames packed per row: smallest power of two >= 4 making P*dim lane-dense."""
    p = 4
    while p * dim < 128 and p < N_FRAMES:
        p *= 2
    return p


def _pick_tb(batch, pack, dim):
    """Batch elements per grid step: big enough to amortize per-step cost, small
    enough that the double-buffered output block stays ~<= 8 MiB (v7x VMEM cap),
    and not larger than needed for small batches (keeps >= 2 steps when possible)."""
    by_vmem = max(8, (8 * 1024 * 1024) // (N_FRAMES * dim * 4))
    by_batch = max(8, _rup(_cdiv(batch, 2), 8))
    tb = min(256, by_vmem, by_batch)
    return max(8, (tb // 8) * 8)


def _make_kernel(rows_per_elem):
    """Fused 3-layer conv as three block-Toeplitz matmuls on packed rows."""

    def kernel(x_ref, w1_ref, b1_ref, w2_ref, b2_ref, w3_ref, b3_ref, o_ref):
        mp = o_ref.shape[0]
        # Row index inside its batch element, computed ONCE and reused by all layers
        # (hoisted boundary masks == Conv1d zero padding at element edges).
        row = lax.broadcasted_iota(jnp.int32, (mp, 1), 0) % rows_per_elem
        ok_prev = row > 0
        ok_next = row < (rows_per_elem - 1)

        def halo_cat(h):
            # (mp, W) -> (mp, 3W): [prev-row | self | next-row], zero across element
            # boundaries. Only +-1 sublane shifts are needed since PAD=3 < P.
            w = h.shape[1]
            z = jnp.zeros((1, w), h.dtype)
            prev = jnp.concatenate([z, h[:-1, :]], axis=0)
            nxt = jnp.concatenate([h[1:, :], z], axis=0)
            prev = jnp.where(ok_prev, prev, jnp.zeros_like(prev))
            nxt = jnp.where(ok_next, nxt, jnp.zeros_like(nxt))
            return jnp.concatenate([prev, h, nxt], axis=-1)

        h = x_ref[...]                                                  # (mp, P)
        h = _leaky(jnp.dot(halo_cat(h), w1_ref[...],
                           preferred_element_type=jnp.float32) + b1_ref[...])
        h = _leaky(jnp.dot(halo_cat(h), w2_ref[...],
                           preferred_element_type=jnp.float32) + b2_ref[...])
        o_ref[...] = jnp.dot(halo_cat(h), w3_ref[...],
                             preferred_element_type=jnp.float32) + b3_ref[...]

    return kernel


def init_params(key, dim):
    """Deterministic init in PyTorch Conv1d layout: weight (Cout, Cin, K), bias (Cout,)."""
    ks = jax.random.split(key, 6)

    def conv(kw, kb, cout, cin):
        bound = 1.0 / (cin * KSIZE) ** 0.5
        w = jax.random.uniform(kw, (cout, cin, KSIZE), jnp.float32, -bound, bound)
        b = jax.random.uniform(kb, (cout,), jnp.float32, -bound, bound)
        return w, b

    w1, b1 = conv(ks[0], ks[1], 16, 1)
    w2, b2 = conv(ks[2], ks[3], 32, 16)
    w3, b3 = conv(ks[4], ks[5], dim, 32)
    return (w1, b1), (w2, b2), (w3, b3)


def _prep_weights(params, dim, pack):
    """(Cout, Cin, K) conv weights -> block-Toeplitz matrices for the packed layout.

    Wp[(s+1)*P*Cin + jj*Cin + c, j*Cout + o] = W[o, c, k]  with  k = s*P + jj - j + PAD
    (zero where k falls outside [0, K)).  bp[0, j*Cout + o] = b[o].
    """
    (w1, b1), (w2, b2), (w3, b3) = params

    def pack_conv(w, b, cin, cout):
        blocks = []
        for s in (-1, 0, 1):
            for jj in range(pack):
                row_blocks = []
                for j in range(pack):
                    k = s * pack + jj - j + PAD
                    if 0 <= k < KSIZE:
                        row_blocks.append(jnp.transpose(w[:, :, k]))   # (cin, cout)
                    else:
                        row_blocks.append(jnp.zeros((cin, cout), jnp.float32))
                blocks.append(jnp.concatenate(row_blocks, axis=1))     # (cin, P*cout)
        wp = jnp.concatenate(blocks, axis=0).astype(jnp.float32)       # (3*P*cin, P*cout)
        bp = jnp.tile(b.astype(jnp.float32), pack)[None, :]            # (1, P*cout)
        return wp, bp

    w1p, b1p = pack_conv(w1, b1, 1, 16)
    w2p, b2p = pack_conv(w2, b2, 16, 32)
    w3p, b3p = pack_conv(w3, b3, 32, dim)
    return w1p, b1p, w2p, b2p, w3p, b3p


def embed_amp_pallas(x, params, dim):
    pack = _pick_pack(dim)
    rows_per_elem = N_FRAMES // pack

    B = x.size // N_FRAMES
    x2 = jnp.reshape(x, (B, N_FRAMES)).astype(jnp.float32)

    TB = _pick_tb(B, pack, dim)
    B_pad = _rup(B, TB)
    if B_pad != B:
        x2 = jnp.pad(x2, ((0, B_pad - B), (0, 0)))

    # Free row-major reshape: (B_pad, 64) -> (B_pad*16, 4). No im2col in the wrapper.
    x_packed = x2.reshape(B_pad * rows_per_elem, pack)

    w1p, b1p, w2p, b2p, w3p, b3p = _prep_weights(params, dim, pack)

    Mp = TB * rows_per_elem
    grid = (B_pad // TB,)

    def const_spec(a):    # tiny weight/bias arrays stay resident across the grid
        return pl.BlockSpec(a.shape, lambda b: (0, 0))

    out = pl.pallas_call(
        _make_kernel(rows_per_elem),
        out_shape=jax.ShapeDtypeStruct((B_pad * rows_per_elem, pack * dim), jnp.float32),
        grid=grid,
        in_specs=[
            pl.BlockSpec((Mp, pack), lambda b: (b, 0)),        # pipelined raw input
            const_spec(w1p), const_spec(b1p),
            const_spec(w2p), const_spec(b2p),
            const_spec(w3p), const_spec(b3p),
        ],
        out_specs=pl.BlockSpec((Mp, pack * dim), lambda b: (b, 0)),   # lane-dense
        compiler_params=pltpu.CompilerParams(
            dimension_semantics=("parallel",),                  # megacore / dual-TC
            vmem_limit_bytes=48 * 1024 * 1024,                  # explicit; < v7x 64 MiB
        ),
    )(x_packed, w1p, b1p, w2p, b2p, w3p, b3p)

    # (R, P*dim) -> (B_pad*64, dim) is the same row-major bytes (free), then drop pad.
    out = out.reshape(B_pad * N_FRAMES, dim)[:B * N_FRAMES]
    return out.reshape(B, N_FRAMES, dim)


def embed_amp_ref(x, params, dim):
    """Pure-JAX reference mirroring the PyTorch module (NCL layout)."""
    (w1, b1), (w2, b2), (w3, b3) = params
    B = x.size // N_FRAMES
    h = jnp.reshape(x, (B, 1, N_FRAMES)).astype(jnp.float32)

    def conv(h, w, b):
        y = lax.conv_general_dilated(
            h, w, window_strides=(1,), padding=[(PAD, PAD)],
            dimension_numbers=('NCH', 'OIH', 'NCH'),
            precision=lax.Precision.HIGHEST)
        return y + b[None, :, None]

    h = _leaky(conv(h, w1, b1))
    h = _leaky(conv(h, w2, b2))
    h = conv(h, w3, b3)
    return jnp.transpose(h, (0, 2, 1))                          # (B, n_frames, dim)


if __name__ == "__main__":
    dim = 32
    key = jax.random.PRNGKey(0)
    kx, kp, kx2 = jax.random.split(key, 3)
    params = init_params(kp, dim)

    # Small case consistent with forward(): view(-1, 1, n_frames) -> (2, 1, 64).
    x = jax.random.normal(kx, (2, N_FRAMES), jnp.float32)
    out = jax.block_until_ready(embed_amp_pallas(x, params, dim))
    ref = jax.block_until_ready(embed_amp_ref(x, params, dim))
    assert out.shape == (2, N_FRAMES, dim), out.shape
    err = float(jnp.max(jnp.abs(out - ref)))
    assert jnp.allclose(out, ref, atol=2e-3, rtol=2e-3), err

    # Multi-grid-step case (B > TB, B % TB != 0): exercises pipelining, padded-row
    # drop and (on v7x) megacore splitting of the parallel grid axis.
    xb = jax.random.normal(kx2, (20, N_FRAMES), jnp.float32)
    outb = jax.block_until_ready(embed_amp_pallas(xb, params, dim))
    refb = jax.block_until_ready(embed_amp_ref(xb, params, dim))
    assert outb.shape == (20, N_FRAMES, dim), outb.shape
    errb = float(jnp.max(jnp.abs(outb - refb)))
    assert jnp.allclose(outb, refb, atol=2e-3, rtol=2e-3), errb

    print("KERNEL_OK")
</pallas_src>

<mosaic_0001>
module attributes {stable_mosaic.version = 11 : i64} {
  func.func @kernel(%arg0: i32, %arg1: memref<128x4xf32, #tpu.memory_space<vmem>>, %arg2: memref<12x64xf32, #tpu.memory_space<vmem>>, %arg3: memref<1x64xf32, #tpu.memory_space<vmem>>, %arg4: memref<192x128xf32, #tpu.memory_space<vmem>>, %arg5: memref<1x128xf32, #tpu.memory_space<vmem>>, %arg6: memref<384x128xf32, #tpu.memory_space<vmem>>, %arg7: memref<1x128xf32, #tpu.memory_space<vmem>>, %arg8: memref<128x128xf32, #tpu.memory_space<vmem>>) attributes {dimension_semantics = [#tpu.dimension_semantics<parallel>], iteration_bounds = array<i64: 1>, scalar_prefetch = 0 : i64, scratch_operands = 0 : i64, tpu.core_type = #tpu.core_type<tc>, window_params = [{transform_indices = @transform_0, window_bounds = array<i64: 128, 4>}, {pipeline_mode = #tpu.pipeline_mode<synchronous>, transform_indices = @transform_1, window_bounds = array<i64: 12, 64>}, {pipeline_mode = #tpu.pipeline_mode<synchronous>, transform_indices = @transform_2, window_bounds = array<i64: 1, 64>}, {pipeline_mode = #tpu.pipeline_mode<synchronous>, transform_indices = @transform_3, window_bounds = array<i64: 192, 128>}, {pipeline_mode = #tpu.pipeline_mode<synchronous>, transform_indices = @transform_4, window_bounds = array<i64: 1, 128>}, {pipeline_mode = #tpu.pipeline_mode<synchronous>, transform_indices = @transform_5, window_bounds = array<i64: 384, 128>}, {pipeline_mode = #tpu.pipeline_mode<synchronous>, transform_indices = @transform_6, window_bounds = array<i64: 1, 128>}, {transform_indices = @transform_7, window_bounds = array<i64: 128, 128>}]} {
    %0 = tpu.iota {dimensions = array<i32: 0>} : vector<128x1xi32>
    %c16_i32 = arith.constant 16 : i32
    %c0_i32 = arith.constant 0 : i32
    %1 = arith.cmpi eq, %c16_i32, %c0_i32 : i32
    %c1_i32 = arith.constant 1 : i32
    %2 = arith.select %1, %c1_i32, %c16_i32 : i32
    %3 = vector.broadcast %2 : i32 to vector<128x1xi32>
    %4 = arith.remsi %0, %3 : vector<128x1xi32>
    %c0_i32_0 = arith.constant 0 : i32
    %5 = vector.broadcast %c0_i32_0 : i32 to vector<128x1xi32>
    %6 = arith.cmpi ne, %4, %5 : vector<128x1xi32>
    %c0_i32_1 = arith.constant 0 : i32
    %7 = vector.broadcast %c0_i32_1 : i32 to vector<128x1xi32>
    %8 = arith.cmpi slt, %4, %7 : vector<128x1xi32>
    %c0_i32_2 = arith.constant 0 : i32
    %9 = arith.cmpi slt, %2, %c0_i32_2 : i32
    %10 = vector.broadcast %9 : i1 to vector<128x1xi1>
    %11 = vector.broadcast %10 : vector<128x1xi1> to vector<128x1xi1>
    %12 = arith.xori %8, %11 : vector<128x1xi1>
    %13 = arith.andi %12, %6 : vector<128x1xi1>
    %14 = vector.broadcast %2 : i32 to vector<128x1xi32>
    %15 = arith.addi %4, %14 : vector<128x1xi32>
    %16 = arith.select %13, %15, %4 : vector<128x1xi1>, vector<128x1xi32>
    %c0_i32_3 = arith.constant 0 : i32
    %17 = vector.broadcast %c0_i32_3 : i32 to vector<128x1xi32>
    %18 = arith.cmpi sgt, %16, %17 : vector<128x1xi32>
    %c15_i32 = arith.constant 15 : i32
    %19 = vector.broadcast %c15_i32 : i32 to vector<128x1xi32>
    %20 = arith.cmpi slt, %16, %19 : vector<128x1xi32>
    %c0 = arith.constant 0 : index
    %c0_4 = arith.constant 0 : index
    %21 = vector.load %arg1[%c0, %c0_4] : memref<128x4xf32, #tpu.memory_space<vmem>>, vector<128x4xf32>
    %cst = arith.constant 0.000000e+00 : f32
    %22 = vector.broadcast %cst : f32 to vector<1x4xf32>
    %23 = vector.extract_strided_slice %21 {offsets = [0, 0], sizes = [127, 4], strides = [1, 1]} : vector<128x4xf32> to vector<127x4xf32>
    %24 = tpu.concatenate %22, %23 in 0 : vector<1x4xf32>, vector<127x4xf32> -> vector<128x4xf32>
    %25 = vector.extract_strided_slice %21 {offsets = [1, 0], sizes = [127, 4], strides = [1, 1]} : vector<128x4xf32> to vector<127x4xf32>
    %26 = tpu.concatenate %25, %22 in 0 : vector<127x4xf32>, vector<1x4xf32> -> vector<128x4xf32>
    %cst_5 = arith.constant 0.000000e+00 : f32
    %27 = vector.broadcast %cst_5 : f32 to vector<128x4xf32>
    %28 = vector.shape_cast %18 : vector<128x1xi1> to vector<128x1xi1>
    %29 = vector.broadcast %28 : vector<128x1xi1> to vector<128x4xi1>
    %30 = arith.select %29, %24, %27 : vector<128x4xi1>, vector<128x4xf32>
    %cst_6 = arith.constant 0.000000e+00 : f32
    %31 = vector.broadcast %cst_6 : f32 to vector<128x4xf32>
    %32 = vector.shape_cast %20 : vector<128x1xi1> to vector<128x1xi1>
    %33 = vector.broadcast %32 : vector<128x1xi1> to vector<128x4xi1>
    %34 = arith.select %33, %26, %31 : vector<128x4xi1>, vector<128x4xf32>
    %35 = tpu.concatenate %30, %21, %34 in 1 : vector<128x4xf32>, vector<128x4xf32>, vector<128x4xf32> -> vector<128x12xf32>
    %c0_7 = arith.constant 0 : index
    %c0_8 = arith.constant 0 : index
    %36 = vector.load %arg2[%c0_7, %c0_8] : memref<12x64xf32, #tpu.memory_space<vmem>>, vector<12x64xf32>
    %cst_9 = arith.constant dense<0.000000e+00> : vector<128x64xf32>
    %37 = tpu.matmul %35, %36, %cst_9 {dimension_numbers = #tpu.dot_dimension_numbers<[1], [0], [0], [1], [0, 0, 1, 1], [], []>} : vector<128x12xf32>, vector<12x64xf32>, vector<128x64xf32> -> vector<128x64xf32>
    %c0_10 = arith.constant 0 : index
    %c0_11 = arith.constant 0 : index
    %38 = vector.load %arg3[%c0_10, %c0_11] : memref<1x64xf32, #tpu.memory_space<vmem>>, vector<1x64xf32>
    %39 = vector.broadcast %38 : vector<1x64xf32> to vector<128x64xf32>
    %40 = arith.addf %37, %39 : vector<128x64xf32>
    %cst_12 = arith.constant 0.000000e+00 : f32
    %41 = vector.broadcast %cst_12 : f32 to vector<128x64xf32>
    %42 = arith.cmpf ogt, %40, %41 : vector<128x64xf32>
    %cst_13 = arith.constant 2.000000e-01 : f32
    %43 = vector.broadcast %cst_13 : f32 to vector<128x64xf32>
    %44 = arith.mulf %43, %40 : vector<128x64xf32>
    %45 = arith.select %42, %40, %44 : vector<128x64xi1>, vector<128x64xf32>
    %cst_14 = arith.constant 0.000000e+00 : f32
    %46 = vector.broadcast %cst_14 : f32 to vector<1x64xf32>
    %47 = vector.extract_strided_slice %45 {offsets = [0, 0], sizes = [127, 64], strides = [1, 1]} : vector<128x64xf32> to vector<127x64xf32>
    %48 = tpu.concatenate %46, %47 in 0 : vector<1x64xf32>, vector<127x64xf32> -> vector<128x64xf32>
    %49 = vector.extract_strided_slice %45 {offsets = [1, 0], sizes = [127, 64], strides = [1, 1]} : vector<128x64xf32> to vector<127x64xf32>
    %50 = tpu.concatenate %49, %46 in 0 : vector<127x64xf32>, vector<1x64xf32> -> vector<128x64xf32>
    %cst_15 = arith.constant 0.000000e+00 : f32
    %51 = vector.broadcast %cst_15 : f32 to vector<128x64xf32>
    %52 = vector.shape_cast %18 : vector<128x1xi1> to vector<128x1xi1>
    %53 = vector.broadcast %52 : vector<128x1xi1> to vector<128x64xi1>
    %54 = arith.select %53, %48, %51 : vector<128x64xi1>, vector<128x64xf32>
    %cst_16 = arith.constant 0.000000e+00 : f32
    %55 = vector.broadcast %cst_16 : f32 to vector<128x64xf32>
    %56 = vector.shape_cast %20 : vector<128x1xi1> to vector<128x1xi1>
    %57 = vector.broadcast %56 : vector<128x1xi1> to vector<128x64xi1>
    %58 = arith.select %57, %50, %55 : vector<128x64xi1>, vector<128x64xf32>
    %59 = tpu.concatenate %54, %45, %58 in 1 : vector<128x64xf32>, vector<128x64xf32>, vector<128x64xf32> -> vector<128x192xf32>
    %c0_17 = arith.constant 0 : index
    %c0_18 = arith.constant 0 : index
    %60 = vector.load %arg4[%c0_17, %c0_18] : memref<192x128xf32, #tpu.memory_space<vmem>>, vector<192x128xf32>
    %cst_19 = arith.constant dense<0.000000e+00> : vector<128x128xf32>
    %61 = tpu.matmul %59, %60, %cst_19 {dimension_numbers = #tpu.dot_dimension_numbers<[1], [0], [0], [1], [0, 0, 1, 1], [], []>} : vector<128x192xf32>, vector<192x128xf32>, vector<128x128xf32> -> vector<128x128xf32>
    %c0_20 = arith.constant 0 : index
    %c0_21 = arith.constant 0 : index
    %62 = vector.load %arg5[%c0_20, %c0_21] : memref<1x128xf32, #tpu.memory_space<vmem>>, vector<1x128xf32>
    %63 = vector.broadcast %62 : vector<1x128xf32> to vector<128x128xf32>
    %64 = arith.addf %61, %63 : vector<128x128xf32>
    %cst_22 = arith.constant 0.000000e+00 : f32
    %65 = vector.broadcast %cst_22 : f32 to vector<128x128xf32>
    %66 = arith.cmpf ogt, %64, %65 : vector<128x128xf32>
    %cst_23 = arith.constant 2.000000e-01 : f32
    %67 = vector.broadcast %cst_23 : f32 to vector<128x128xf32>
    %68 = arith.mulf %67, %64 : vector<128x128xf32>
    %69 = arith.select %66, %64, %68 : vector<128x128xi1>, vector<128x128xf32>
    %cst_24 = arith.constant 0.000000e+00 : f32
    %70 = vector.broadcast %cst_24 : f32 to vector<1x128xf32>
    %71 = vector.extract_strided_slice %69 {offsets = [0, 0], sizes = [127, 128], strides = [1, 1]} : vector<128x128xf32> to vector<127x128xf32>
    %72 = tpu.concatenate %70, %71 in 0 : vector<1x128xf32>, vector<127x128xf32> -> vector<128x128xf32>
    %73 = vector.extract_strided_slice %69 {offsets = [1, 0], sizes = [127, 128], strides = [1, 1]} : vector<128x128xf32> to vector<127x128xf32>
    %74 = tpu.concatenate %73, %70 in 0 : vector<127x128xf32>, vector<1x128xf32> -> vector<128x128xf32>
    %cst_25 = arith.constant 0.000000e+00 : f32
    %75 = vector.broadcast %cst_25 : f32 to vector<128x128xf32>
    %76 = vector.shape_cast %18 : vector<128x1xi1> to vector<128x1xi1>
    %77 = vector.broadcast %76 : vector<128x1xi1> to vector<128x128xi1>
    %78 = arith.select %77, %72, %75 : vector<128x128xi1>, vector<128x128xf32>
    %cst_26 = arith.constant 0.000000e+00 : f32
    %79 = vector.broadcast %cst_26 : f32 to vector<128x128xf32>
    %80 = vector.shape_cast %20 : vector<128x1xi1> to vector<128x1xi1>
    %81 = vector.broadcast %80 : vector<128x1xi1> to vector<128x128xi1>
    %82 = arith.select %81, %74, %79 : vector<128x128xi1>, vector<128x128xf32>
    %83 = tpu.concatenate %78, %69, %82 in 1 : vector<128x128xf32>, vector<128x128xf32>, vector<128x128xf32> -> vector<128x384xf32>
    %c0_27 = arith.constant 0 : index
    %c0_28 = arith.constant 0 : index
    %84 = vector.load %arg6[%c0_27, %c0_28] : memref<384x128xf32, #tpu.memory_space<vmem>>, vector<384x128xf32>
    %cst_29 = arith.constant dense<0.000000e+00> : vector<128x128xf32>
    %85 = tpu.matmul %83, %84, %cst_29 {dimension_numbers = #tpu.dot_dimension_numbers<[1], [0], [0], [1], [0, 0, 1, 1], [], []>} : vector<128x384xf32>, vector<384x128xf32>, vector<128x128xf32> -> vector<128x128xf32>
    %c0_30 = arith.constant 0 : index
    %c0_31 = arith.constant 0 : index
    %86 = vector.load %arg7[%c0_30, %c0_31] : memref<1x128xf32, #tpu.memory_space<vmem>>, vector<1x128xf32>
    %87 = vector.broadcast %86 : vector<1x128xf32> to vector<128x128xf32>
    %88 = arith.addf %85, %87 : vector<128x128xf32>
    %c0_32 = arith.constant 0 : index
    %c0_33 = arith.constant 0 : index
    %89 = vector.load %arg8[%c0_32, %c0_33] : memref<128x128xf32, #tpu.memory_space<vmem>>, vector<128x128xf32>
    tpu.vector_store %arg8[%c0_32, %c0_33], %88 {strides = array<i32>} : memref<128x128xf32, #tpu.memory_space<vmem>>, vector<128x128xf32>,
    return
  }
  func.func @transform_0(%arg0: i32) -> (i32, i32) {
    %c0_i32 = arith.constant 0 : i32
    %c0_i32_0 = arith.constant 0 : i32
    return %arg0, %c0_i32 : i32, i32
  }
  func.func @transform_1(%arg0: i32) -> (i32, i32) {
    %c0_i32 = arith.constant 0 : i32
    %c0_i32_0 = arith.constant 0 : i32
    %c0_i32_1 = arith.constant 0 : i32
    return %c0_i32, %c0_i32_0 : i32, i32
  }
  func.func @transform_2(%arg0: i32) -> (i32, i32) {
    %c0_i32 = arith.constant 0 : i32
    %c0_i32_0 = arith.constant 0 : i32
    %c0_i32_1 = arith.constant 0 : i32
    return %c0_i32, %c0_i32_0 : i32, i32
  }
  func.func @transform_3(%arg0: i32) -> (i32, i32) {
    %c0_i32 = arith.constant 0 : i32
    %c0_i32_0 = arith.constant 0 : i32
    %c0_i32_1 = arith.constant 0 : i32
    return %c0_i32, %c0_i32_0 : i32, i32
  }
  func.func @transform_4(%arg0: i32) -> (i32, i32) {
    %c0_i32 = arith.constant 0 : i32
    %c0_i32_0 = arith.constant 0 : i32
    %c0_i32_1 = arith.constant 0 : i32
    return %c0_i32, %c0_i32_0 : i32, i32
  }
  func.func @transform_5(%arg0: i32) -> (i32, i32) {
    %c0_i32 = arith.constant 0 : i32
    %c0_i32_0 = arith.constant 0 : i32
    %c0_i32_1 = arith.constant 0 : i32
    return %c0_i32, %c0_i32_0 : i32, i32
  }
  func.func @transform_6(%arg0: i32) -> (i32, i32) {
    %c0_i32 = arith.constant 0 : i32
    %c0_i32_0 = arith.constant 0 : i32
    %c0_i32_1 = arith.constant 0 : i32
    return %c0_i32, %c0_i32_0 : i32, i32
  }
  func.func @transform_7(%arg0: i32) -> (i32, i32) {
    %c0_i32 = arith.constant 0 : i32
    %c0_i32_0 = arith.constant 0 : i32
    return %arg0, %c0_i32 : i32, i32
  }
}

</mosaic_0001>

<llo_original>
// kernel: tpu_custom_call.1
$region0: #{tpu_custom_call.1}
  #allocation0 [shape = 'u32[]', space=smem, size = 0x4, offset = 0x4, fixed_abs, tag = 'smem constant byte address 0x4 - core index']
  #allocation1 [shape = 'u32[144,128]{1,0:T(1,128)}', space=vmem, size = 0x12000, scoped, tag = 'internal scratch']
  %s0 = inlined_call_operand.vmem [shape: f32[128,4], index: 0, kind: input, shape index: {}]
  %s1 = inlined_call_operand.vmem [shape: f32[12,64], index: 1, kind: input, shape index: {}]
  %s2 = inlined_call_operand.vmem [shape: f32[1,64], index: 2, kind: input, shape index: {}]
  %s3 = inlined_call_operand.hbm [shape: f32[192,128], index: 3, kind: input, shape index: {}]
  %s4 = inlined_call_operand.vmem [shape: f32[1,128], index: 4, kind: input, shape index: {}]
  %s5 = inlined_call_operand.hbm [shape: f32[384,128], index: 5, kind: input, shape index: {}]
  %s6 = inlined_call_operand.vmem [shape: f32[1,128], index: 6, kind: input, shape index: {}]
  %s7 = inlined_call_operand.hbm [shape: f32[128,128], index: 7, kind: output, shape index: {}]
  %s8 = sld [smem:[#allocation0]]
  $region46: #{tpu_custom_call.1} parent=0
    _
  %s10 = ssub.s32 1, %s8
  %s11 = scalar_select 0, %s10, %s8
  $region1: #{tpu_custom_call.1} parent=0
    #allocation2 [shape = 'u8[98304]{0}', space=vmem, size = 0x18000, scoped, tag = 'input window, operand 3, single buffered']
    #allocation3 [shape = 's32[1]{0}', space=sflag, size = 0x4, scoped, tag = 'scoped memory for tpu_custom_call.1']
    #allocation4 [shape = 's32[1]{0}', space=sflag, size = 0x4, scoped, tag = 'scoped memory for tpu_custom_call.1']
    #allocation5 [shape = 'u8[196608]{0}', space=vmem, size = 0x30000, scoped, tag = 'input window, operand 5, single buffered']
    #allocation6 [shape = 's32[1]{0}', space=sflag, size = 0x4, scoped, tag = 'scoped memory for tpu_custom_call.1']
    #allocation7 [shape = 'u8[65536]{0}', space=vmem, size = 0x10000, scoped, tag = 'output window, operand 0, single buffered']
    %12 = vsyncpa [#allocation3], 0
    %13 = vsyncpa [#allocation6], 0
    %14 = vsyncpa [#allocation4], 0
    // Predicated region
    $region2: #{tpu_custom_call.1} parent=1 // pred_check
      _
    $region3: #{tpu_custom_call.1} parent=1 // pred_check_branch
      %16 = sbr.rel (0) target = $region5
    $region4: #{tpu_custom_call.1} parent=1 // pred_region
      _
    $region5: #{tpu_custom_call.1} parent=1 // pred_fallthru
      _
    // Predicated region
    $region6: #{tpu_custom_call.1} parent=1 // pred_check
      _
    $region7: #{tpu_custom_call.1} parent=1 // pred_check_branch
      %18 = sbr.rel (0) target = $region9
    $region8: #{tpu_custom_call.1} parent=1 // pred_region
      _
    $region9: #{tpu_custom_call.1} parent=1 // pred_fallthru
      _
    // Predicated region
    $region10: #{tpu_custom_call.1} parent=1 // pred_check
      _
    $region11: #{tpu_custom_call.1} parent=1 // pred_check_branch
      %20 = sbr.rel (0) target = $region13
    $region12: #{tpu_custom_call.1} parent=1 // pred_region
      _
    $region13: #{tpu_custom_call.1} parent=1 // pred_fallthru
      _
    // Predicated region
    $region14: #{tpu_custom_call.1} parent=1 // pred_check
      _
    $region15: #{tpu_custom_call.1} parent=1 // pred_check_branch
      %22 = sbr.rel (0) target = $region17
    $region16: #{tpu_custom_call.1} parent=1 // pred_region
      %s24 = ssub.s32 3072, 3072
      %25 = vsyncadd [#allocation3], %s24
      %s26 = sshll.u32 [#allocation2], 4
      %s27 = int_to_ptr.vmem [resolvable:$true] %s26
      %32 = dma.hbm_to_vmem [thread:$0]  %s3, 3072, %s27, [#allocation3], 128, 128, 8
    $region17: #{tpu_custom_call.1} parent=1 // pred_fallthru
      _
    // Predicated region
    $region18: #{tpu_custom_call.1} parent=1 // pred_check
      _
    $region19: #{tpu_custom_call.1} parent=1 // pred_check_branch
      %34 = sbr.rel (0) target = $region21
    $region20: #{tpu_custom_call.1} parent=1 // pred_region
      _
    $region21: #{tpu_custom_call.1} parent=1 // pred_fallthru
      _
    // Predicated region
    $region22: #{tpu_custom_call.1} parent=1 // pred_check
      _
    $region23: #{tpu_custom_call.1} parent=1 // pred_check_branch
      %36 = sbr.rel (0) target = $region25
    $region24: #{tpu_custom_call.1} parent=1 // pred_region
      %s38 = ssub.s32 6144, 6144
      %39 = vsyncadd [#allocation6], %s38
      %s40 = sshll.u32 [#allocation5], 4
      %s41 = int_to_ptr.vmem [resolvable:$true] %s40
      %46 = dma.hbm_to_vmem [thread:$0]  %s5, 6144, %s41, [#allocation6], 128, 128, 8
    $region25: #{tpu_custom_call.1} parent=1 // pred_fallthru
      _
    // Predicated region
    $region26: #{tpu_custom_call.1} parent=1 // pred_check
      _
    $region27: #{tpu_custom_call.1} parent=1 // pred_check_branch
      %48 = sbr.rel (0) target = $region29
    $region28: #{tpu_custom_call.1} parent=1 // pred_region
      _
    $region29: #{tpu_custom_call.1} parent=1 // pred_fallthru
      _
    // Predicated region
    $region30: #{tpu_custom_call.1} parent=1 // pred_check
      _
    $region31: #{tpu_custom_call.1} parent=1 // pred_check_branch
      %50 = sbr.rel (0) target = $region33
    $region32: #{tpu_custom_call.1} parent=1 // pred_region
      %51 = dma.done [#allocation3], 3072
    $region33: #{tpu_custom_call.1} parent=1 // pred_fallthru
      _
    // Predicated region
    $region34: #{tpu_custom_call.1} parent=1 // pred_check
      _
    $region35: #{tpu_custom_call.1} parent=1 // pred_check_branch
      %53 = sbr.rel (0) target = $region37
    $region36: #{tpu_custom_call.1} parent=1 // pred_region
      %54 = dma.done [#allocation6], 6144
    $region37: #{tpu_custom_call.1} parent=1 // pred_fallthru
      _
    %v55 = vlaneseq
    %v56 = vshrl.u32 %v55, 7
    %v57 = vadd.s32 %v56, 8
    %v58 = vadd.s32 %v56, 16
    %v59 = vadd.s32 %v56, 24
    %v60 = vadd.s32 %v56, 32
    %v61 = vadd.s32 %v56, 40
    %v62 = vadd.s32 %v56, 48
    %v63 = vadd.s32 %v56, 56
    %v64 = vadd.s32 %v56, 64
    %v65 = vadd.s32 %v56, 72
    %v66 = vadd.s32 %v56, 80
    %v67 = vadd.s32 %v56, 88
    %v68 = vadd.s32 %v56, 96
    %v69 = vadd.s32 %v56, 104
    %v70 = vadd.s32 %v56, 112
    %v71 = vadd.s32 %v56, 120
    %vm72 = vcmp.lt.s32.totalorder %v56, 0
    %v73 = vsub.s32 0, %v56
    %v74 = vsel %vm72, %v73, %v56
    %v75 = vshrl.u32 %v74, 4
    %v76 = vand.u32 %v74, 15
    %v77 = vsub.s32 0, %v76
    %v78 = vsel %vm72, %v77, %v76
    %vm79 = vcmp.lt.s32.totalorder %v57, 0
    %v80 = vsub.s32 0, %v57
    %v81 = vsel %vm79, %v80, %v57
    %v82 = vshrl.u32 %v81, 4
    %v83 = vand.u32 %v81, 15
    %v84 = vsub.s32 0, %v83
    %v85 = vsel %vm79, %v84, %v83
    %vm86 = vcmp.lt.s32.totalorder %v58, 0
    %v87 = vsub.s32 0, %v58
    %v88 = vsel %vm86, %v87, %v58
    %v89 = vshrl.u32 %v88, 4
    %v90 = vand.u32 %v88, 15
    %v91 = vsub.s32 0, %v90
    %v92 = vsel %vm86, %v91, %v90
    %vm93 = vcmp.lt.s32.totalorder %v59, 0
    %v94 = vsub.s32 0, %v59
    %v95 = vsel %vm93, %v94, %v59
    %v96 = vshrl.u32 %v95, 4
    %v97 = vand.u32 %v95, 15
    %v98 = vsub.s32 0, %v97
    %v99 = vsel %vm93, %v98, %v97
    %vm100 = vcmp.lt.s32.totalorder %v60, 0
    %v101 = vsub.s32 0, %v60
    %v102 = vsel %vm100, %v101, %v60
    %v103 = vshrl.u32 %v102, 4
    %v104 = vand.u32 %v102, 15
    %v105 = vsub.s32 0, %v104
    %v106 = vsel %vm100, %v105, %v104
    %vm107 = vcmp.lt.s32.totalorder %v61, 0
    %v108 = vsub.s32 0, %v61
    %v109 = vsel %vm107, %v108, %v61
    %v110 = vshrl.u32 %v109, 4
    %v111 = vand.u32 %v109, 15
    %v112 = vsub.s32 0, %v111
    %v113 = vsel %vm107, %v112, %v111
    %vm114 = vcmp.lt.s32.totalorder %v62, 0
    %v115 = vsub.s32 0, %v62
    %v116 = vsel %vm114, %v115, %v62
    %v117 = vshrl.u32 %v116, 4
    %v118 = vand.u32 %v116, 15
    %v119 = vsub.s32 0, %v118
    %v120 = vsel %vm114, %v119, %v118
    %vm121 = vcmp.lt.s32.totalorder %v63, 0
    %v122 = vsub.s32 0, %v63
    %v123 = vsel %vm121, %v122, %v63
    %v124 = vshrl.u32 %v123, 4
    %v125 = vand.u32 %v123, 15
    %v126 = vsub.s32 0, %v125
    %v127 = vsel %vm121, %v126, %v125
    %vm128 = vcmp.lt.s32.totalorder %v64, 0
    %v129 = vsub.s32 0, %v64
    %v130 = vsel %vm128, %v129, %v64
    %v131 = vshrl.u32 %v130, 4
    %v132 = vand.u32 %v130, 15
    %v133 = vsub.s32 0, %v132
    %v134 = vsel %vm128, %v133, %v132
    %vm135 = vcmp.lt.s32.totalorder %v65, 0
    %v136 = vsub.s32 0, %v65
    %v137 = vsel %vm135, %v136, %v65
    %v138 = vshrl.u32 %v137, 4
    %v139 = vand.u32 %v137, 15
    %v140 = vsub.s32 0, %v139
    %v141 = vsel %vm135, %v140, %v139
    %vm142 = vcmp.lt.s32.totalorder %v66, 0
    %v143 = vsub.s32 0, %v66
    %v144 = vsel %vm142, %v143, %v66
    %v145 = vshrl.u32 %v144, 4
    %v146 = vand.u32 %v144, 15
    %v147 = vsub.s32 0, %v146
    %v148 = vsel %vm142, %v147, %v146
    %vm149 = vcmp.lt.s32.totalorder %v67, 0
    %v150 = vsub.s32 0, %v67
    %v151 = vsel %vm149, %v150, %v67
    %v152 = vshrl.u32 %v151, 4
    %v153 = vand.u32 %v151, 15
    %v154 = vsub.s32 0, %v153
    %v155 = vsel %vm149, %v154, %v153
    %vm156 = vcmp.lt.s32.totalorder %v68, 0
    %v157 = vsub.s32 0, %v68
    %v158 = vsel %vm156, %v157, %v68
    %v159 = vshrl.u32 %v158, 4
    %v160 = vand.u32 %v158, 15
    %v161 = vsub.s32 0, %v160
    %v162 = vsel %vm156, %v161, %v160
    %vm163 = vcmp.lt.s32.totalorder %v69, 0
    %v164 = vsub.s32 0, %v69
    %v165 = vsel %vm163, %v164, %v69
    %v166 = vshrl.u32 %v165, 4
    %v167 = vand.u32 %v165, 15
    %v168 = vsub.s32 0, %v167
    %v169 = vsel %vm163, %v168, %v167
    %vm170 = vcmp.lt.s32.totalorder %v70, 0
    %v171 = vsub.s32 0, %v70
    %v172 = vsel %vm170, %v171, %v70
    %v173 = vshrl.u32 %v172, 4
    %v174 = vand.u32 %v172, 15
    %v175 = vsub.s32 0, %v174
    %v176 = vsel %vm170, %v175, %v174
    %vm177 = vcmp.lt.s32.totalorder %v71, 0
    %v178 = vsub.s32 0, %v71
    %v179 = vsel %vm177, %v178, %v71
    %v180 = vshrl.u32 %v179, 4
    %v181 = vand.u32 %v179, 15
    %v182 = vsub.s32 0, %v181
    %v183 = vsel %vm177, %v182, %v181
    %vm184 = vcmp.ne.s32.totalorder %v78, 0
    %vm185 = vcmp.ne.s32.totalorder %v85, 0
    %vm186 = vcmp.ne.s32.totalorder %v92, 0
    %vm187 = vcmp.ne.s32.totalorder %v99, 0
    %vm188 = vcmp.ne.s32.totalorder %v106, 0
    %vm189 = vcmp.ne.s32.totalorder %v113, 0
    %vm190 = vcmp.ne.s32.totalorder %v120, 0
    %vm191 = vcmp.ne.s32.totalorder %v127, 0
    %vm192 = vcmp.ne.s32.totalorder %v134, 0
    %vm193 = vcmp.ne.s32.totalorder %v141, 0
    %vm194 = vcmp.ne.s32.totalorder %v148, 0
    %vm195 = vcmp.ne.s32.totalorder %v155, 0
    %vm196 = vcmp.ne.s32.totalorder %v162, 0
    %vm197 = vcmp.ne.s32.totalorder %v169, 0
    %vm198 = vcmp.ne.s32.totalorder %v176, 0
    %vm199 = vcmp.ne.s32.totalorder %v183, 0
    %vm200 = vcmp.lt.s32.totalorder %v78, 0
    %vm201 = vcmp.lt.s32.totalorder %v85, 0
    %vm202 = vcmp.lt.s32.totalorder %v92, 0
    %vm203 = vcmp.lt.s32.totalorder %v99, 0
    %vm204 = vcmp.lt.s32.totalorder %v106, 0
    %vm205 = vcmp.lt.s32.totalorder %v113, 0
    %vm206 = vcmp.lt.s32.totalorder %v120, 0
    %vm207 = vcmp.lt.s32.totalorder %v127, 0
    %vm208 = vcmp.lt.s32.totalorder %v134, 0
    %vm209 = vcmp.lt.s32.totalorder %v141, 0
    %vm210 = vcmp.lt.s32.totalorder %v148, 0
    %vm211 = vcmp.lt.s32.totalorder %v155, 0
    %vm212 = vcmp.lt.s32.totalorder %v162, 0
    %vm213 = vcmp.lt.s32.totalorder %v169, 0
    %vm214 = vcmp.lt.s32.totalorder %v176, 0
    %vm215 = vcmp.lt.s32.totalorder %v183, 0
    %vm216 = vmand %vm200, %vm184
    %vm217 = vmand %vm201, %vm185
    %vm218 = vmand %vm202, %vm186
    %vm219 = vmand %vm203, %vm187
    %vm220 = vmand %vm204, %vm188
    %vm221 = vmand %vm205, %vm189
    %vm222 = vmand %vm206, %vm190
    %vm223 = vmand %vm207, %vm191
    %vm224 = vmand %vm208, %vm192
    %vm225 = vmand %vm209, %vm193
    %vm226 = vmand %vm210, %vm194
    %vm227 = vmand %vm211, %vm195
    %vm228 = vmand %vm212, %vm196
    %vm229 = vmand %vm213, %vm197
    %vm230 = vmand %vm214, %vm198
    %vm231 = vmand %vm215, %vm199
    %v232 = vadd.s32 %v78, 16
    %v233 = vadd.s32 %v85, 16
    %v234 = vadd.s32 %v92, 16
    %v235 = vadd.s32 %v99, 16
    %v236 = vadd.s32 %v106, 16
    %v237 = vadd.s32 %v113, 16
    %v238 = vadd.s32 %v120, 16
    %v239 = vadd.s32 %v127, 16
    %v240 = vadd.s32 %v134, 16
    %v241 = vadd.s32 %v141, 16
    %v242 = vadd.s32 %v148, 16
    %v243 = vadd.s32 %v155, 16
    %v244 = vadd.s32 %v162, 16
    %v245 = vadd.s32 %v169, 16
    %v246 = vadd.s32 %v176, 16
    %v247 = vadd.s32 %v183, 16
    %v248 = vsel %vm216, %v232, %v78
    %v249 = vsel %vm217, %v233, %v85
    %v250 = vsel %vm218, %v234, %v92
    %v251 = vsel %vm219, %v235, %v99
    %v252 = vsel %vm220, %v236, %v106
    %v253 = vsel %vm221, %v237, %v113
    %v254 = vsel %vm222, %v238, %v120
    %v255 = vsel %vm223, %v239, %v127
    %v256 = vsel %vm224, %v240, %v134
    %v257 = vsel %vm225, %v241, %v141
    %v258 = vsel %vm226, %v242, %v148
    %v259 = vsel %vm227, %v243, %v155
    %v260 = vsel %vm228, %v244, %v162
    %v261 = vsel %vm229, %v245, %v169
    %v262 = vsel %vm230, %v246, %v176
    %v263 = vsel %vm231, %v247, %v183
    %vm264 = vcmp.gt.s32.totalorder %v248, 0
    %vm265 = vcmp.gt.s32.totalorder %v249, 0
    %vm266 = vcmp.gt.s32.totalorder %v250, 0
    %vm267 = vcmp.gt.s32.totalorder %v251, 0
    %vm268 = vcmp.gt.s32.totalorder %v252, 0
    %vm269 = vcmp.gt.s32.totalorder %v253, 0
    %vm270 = vcmp.gt.s32.totalorder %v254, 0
    %vm271 = vcmp.gt.s32.totalorder %v255, 0
    %vm272 = vcmp.gt.s32.totalorder %v256, 0
    %vm273 = vcmp.gt.s32.totalorder %v257, 0
    %vm274 = vcmp.gt.s32.totalorder %v258, 0
    %vm275 = vcmp.gt.s32.totalorder %v259, 0
    %vm276 = vcmp.gt.s32.totalorder %v260, 0
    %vm277 = vcmp.gt.s32.totalorder %v261, 0
    %vm278 = vcmp.gt.s32.totalorder %v262, 0
    %vm279 = vcmp.gt.s32.totalorder %v263, 0
    %vm280 = vcmp.lt.s32.totalorder %v248, 15
    %vm281 = vcmp.lt.s32.totalorder %v249, 15
    %vm282 = vcmp.lt.s32.totalorder %v250, 15
    %vm283 = vcmp.lt.s32.totalorder %v251, 15
    %vm284 = vcmp.lt.s32.totalorder %v252, 15
    %vm285 = vcmp.lt.s32.totalorder %v253, 15
    %vm286 = vcmp.lt.s32.totalorder %v254, 15
    %vm287 = vcmp.lt.s32.totalorder %v255, 15
    %vm288 = vcmp.lt.s32.totalorder %v256, 15
    %vm289 = vcmp.lt.s32.totalorder %v257, 15
    %vm290 = vcmp.lt.s32.totalorder %v258, 15
    %vm291 = vcmp.lt.s32.totalorder %v259, 15
    %vm292 = vcmp.lt.s32.totalorder %v260, 15
    %vm293 = vcmp.lt.s32.totalorder %v261, 15
    %vm294 = vcmp.lt.s32.totalorder %v262, 15
    %vm295 = vcmp.lt.s32.totalorder %v263, 15
    %v296 = vld [vmem:[%s0] sm:$0xff]
    %v297 = vld [vmem:[%s0 + $0x8] sm:$0xff]
    %v298 = vld [vmem:[%s0 + $0x10] sm:$0xff]
    %v299 = vld [vmem:[%s0 + $0x18] sm:$0xff]
    %v300 = vld [vmem:[%s0 + $0x20] sm:$0xff]
    %v301 = vld [vmem:[%s0 + $0x28] sm:$0xff]
    %v302 = vld [vmem:[%s0 + $0x30] sm:$0xff]
    %v303 = vld [vmem:[%s0 + $0x38] sm:$0xff]
    %v304 = vld [vmem:[%s0 + $0x40] sm:$0xff]
    %v305 = vld [vmem:[%s0 + $0x48] sm:$0xff]
    %v306 = vld [vmem:[%s0 + $0x50] sm:$0xff]
    %v307 = vld [vmem:[%s0 + $0x58] sm:$0xff]
    %v308 = vld [vmem:[%s0 + $0x60] sm:$0xff]
    %v309 = vld [vmem:[%s0 + $0x68] sm:$0xff]
    %v310 = vld [vmem:[%s0 + $0x70] sm:$0xff]
    %v311 = vld [vmem:[%s0 + $0x78] sm:$0xff]
    %vm328 = vcmask 1040384
    %v329 = vrot.slane %v296, 7
    %v330 = vrot.slane %v297, 7
    %v331 = vsel %vm328, %v329, %v330
    %v332 = vrot.slane %v298, 7
    %v333 = vsel %vm328, %v330, %v332
    %v334 = vrot.slane %v299, 7
    %v335 = vsel %vm328, %v332, %v334
    %v336 = vrot.slane %v300, 7
    %v337 = vsel %vm328, %v334, %v336
    %v338 = vrot.slane %v301, 7
    %v339 = vsel %vm328, %v336, %v338
    %v340 = vrot.slane %v302, 7
    %v341 = vsel %vm328, %v338, %v340
    %v342 = vrot.slane %v303, 7
    %v343 = vsel %vm328, %v340, %v342
    %v344 = vrot.slane %v304, 7
    %v345 = vsel %vm328, %v342, %v344
    %v346 = vrot.slane %v305, 7
    %v347 = vsel %vm328, %v344, %v346
    %v348 = vrot.slane %v306, 7
    %v349 = vsel %vm328, %v346, %v348
    %v350 = vrot.slane %v307, 7
    %v351 = vsel %vm328, %v348, %v350
    %v352 = vrot.slane %v308, 7
    %v353 = vsel %vm328, %v350, %v352
    %v354 = vrot.slane %v309, 7
    %v355 = vsel %vm328, %v352, %v354
    %v356 = vrot.slane %v310, 7
    %v357 = vsel %vm328, %v354, %v356
    %v358 = vrot.slane %v311, 7
    %v359 = vsel %vm328, %v356, %v358
    %v376 = vsel %vm328, 0.0, %v329
    %vm377 = vcmask 1046528
    %v378 = vrot.slane %v296, 1
    %v379 = vrot.slane %v297, 1
    %v380 = vsel %vm377, %v378, %v379
    %v381 = vrot.slane %v298, 1
    %v382 = vsel %vm377, %v379, %v381
    %v383 = vrot.slane %v299, 1
    %v384 = vsel %vm377, %v381, %v383
    %v385 = vrot.slane %v300, 1
    %v386 = vsel %vm377, %v383, %v385
    %v387 = vrot.slane %v301, 1
    %v388 = vsel %vm377, %v385, %v387
    %v389 = vrot.slane %v302, 1
    %v390 = vsel %vm377, %v387, %v389
    %v391 = vrot.slane %v303, 1
    %v392 = vsel %vm377, %v389, %v391
    %v393 = vrot.slane %v304, 1
    %v394 = vsel %vm377, %v391, %v393
    %v395 = vrot.slane %v305, 1
    %v396 = vsel %vm377, %v393, %v395
    %v397 = vrot.slane %v306, 1
    %v398 = vsel %vm377, %v395, %v397
    %v399 = vrot.slane %v307, 1
    %v400 = vsel %vm377, %v397, %v399
    %v401 = vrot.slane %v308, 1
    %v402 = vsel %vm377, %v399, %v401
    %v403 = vrot.slane %v309, 1
    %v404 = vsel %vm377, %v401, %v403
    %v405 = vrot.slane %v310, 1
    %v406 = vsel %vm377, %v403, %v405
    %v407 = vrot.slane %v311, 1
    %v408 = vsel %vm377, %v405, %v407
    %v425 = vsel %vm377, %v407, 0.0
    %v426 = vsel %vm264, 1, 0
    %v427 = vsel %vm265, 1, 0
    %v428 = vsel %vm266, 1, 0
    %v429 = vsel %vm267, 1, 0
    %v430 = vsel %vm268, 1, 0
    %v431 = vsel %vm269, 1, 0
    %v432 = vsel %vm270, 1, 0
    %v433 = vsel %vm271, 1, 0
    %v434 = vsel %vm272, 1, 0
    %v435 = vsel %vm273, 1, 0
    %v436 = vsel %vm274, 1, 0
    %v437 = vsel %vm275, 1, 0
    %v438 = vsel %vm276, 1, 0
    %v439 = vsel %vm277, 1, 0
    %v440 = vsel %vm278, 1, 0
    %v441 = vsel %vm279, 1, 0
    %vm442 = vcmp.eq.s32.totalorder %v426, 1
    %vm443 = vcmp.eq.s32.totalorder %v427, 1
    %vm444 = vcmp.eq.s32.totalorder %v428, 1
    %vm445 = vcmp.eq.s32.totalorder %v429, 1
    %vm446 = vcmp.eq.s32.totalorder %v430, 1
    %vm447 = vcmp.eq.s32.totalorder %v431, 1
    %vm448 = vcmp.eq.s32.totalorder %v432, 1
    %vm449 = vcmp.eq.s32.totalorder %v433, 1
    %vm450 = vcmp.eq.s32.totalorder %v434, 1
    %vm451 = vcmp.eq.s32.totalorder %v435, 1
    %vm452 = vcmp.eq.s32.totalorder %v436, 1
    %vm453 = vcmp.eq.s32.totalorder %v437, 1
    %vm454 = vcmp.eq.s32.totalorder %v438, 1
    %vm455 = vcmp.eq.s32.totalorder %v439, 1
    %vm456 = vcmp.eq.s32.totalorder %v440, 1
    %vm457 = vcmp.eq.s32.totalorder %v441, 1
    %v458 = vsel %vm442, %v376, 0.0
    %v459 = vsel %vm443, %v331, 0.0
    %v460 = vsel %vm444, %v333, 0.0
    %v461 = vsel %vm445, %v335, 0.0
    %v462 = vsel %vm446, %v337, 0.0
    %v463 = vsel %vm447, %v339, 0.0
    %v464 = vsel %vm448, %v341, 0.0
    %v465 = vsel %vm449, %v343, 0.0
    %v466 = vsel %vm450, %v345, 0.0
    %v467 = vsel %vm451, %v347, 0.0
    %v468 = vsel %vm452, %v349, 0.0
    %v469 = vsel %vm453, %v351, 0.0
    %v470 = vsel %vm454, %v353, 0.0
    %v471 = vsel %vm455, %v355, 0.0
    %v472 = vsel %vm456, %v357, 0.0
    %v473 = vsel %vm457, %v359, 0.0
    %v474 = vsel %vm280, 1, 0
    %v475 = vsel %vm281, 1, 0
    %v476 = vsel %vm282, 1, 0
    %v477 = vsel %vm283, 1, 0
    %v478 = vsel %vm284, 1, 0
    %v479 = vsel %vm285, 1, 0
    %v480 = vsel %vm286, 1, 0
    %v481 = vsel %vm287, 1, 0
    %v482 = vsel %vm288, 1, 0
    %v483 = vsel %vm289, 1, 0
    %v484 = vsel %vm290, 1, 0
    %v485 = vsel %vm291, 1, 0
    %v486 = vsel %vm292, 1, 0
    %v487 = vsel %vm293, 1, 0
    %v488 = vsel %vm294, 1, 0
    %v489 = vsel %vm295, 1, 0
    %vm490 = vcmp.eq.s32.totalorder %v474, 1
    %vm491 = vcmp.eq.s32.totalorder %v475, 1
    %vm492 = vcmp.eq.s32.totalorder %v476, 1
    %vm493 = vcmp.eq.s32.totalorder %v477, 1
    %vm494 = vcmp.eq.s32.totalorder %v478, 1
    %vm495 = vcmp.eq.s32.totalorder %v479, 1
    %vm496 = vcmp.eq.s32.totalorder %v480, 1
    %vm497 = vcmp.eq.s32.totalorder %v481, 1
    %vm498 = vcmp.eq.s32.totalorder %v482, 1
    %vm499 = vcmp.eq.s32.totalorder %v483, 1
    %vm500 = vcmp.eq.s32.totalorder %v484, 1
    %vm501 = vcmp.eq.s32.totalorder %v485, 1
    %vm502 = vcmp.eq.s32.totalorder %v486, 1
    %vm503 = vcmp.eq.s32.totalorder %v487, 1
    %vm504 = vcmp.eq.s32.totalorder %v488, 1
    %vm505 = vcmp.eq.s32.totalorder %v489, 1
    %v506 = vsel %vm490, %v380, 0.0
    %v507 = vsel %vm491, %v382, 0.0
    %v508 = vsel %vm492, %v384, 0.0
    %v509 = vsel %vm493, %v386, 0.0
    %v510 = vsel %vm494, %v388, 0.0
    %v511 = vsel %vm495, %v390, 0.0
    %v512 = vsel %vm496, %v392, 0.0
    %v513 = vsel %vm497, %v394, 0.0
    %v514 = vsel %vm498, %v396, 0.0
    %v515 = vsel %vm499, %v398, 0.0
    %v516 = vsel %vm500, %v400, 0.0
    %v517 = vsel %vm501, %v402, 0.0
    %v518 = vsel %vm502, %v404, 0.0
    %v519 = vsel %vm503, %v406, 0.0
    %v520 = vsel %vm504, %v408, 0.0
    %v521 = vsel %vm505, %v425, 0.0
    %522 = vrot.lane.b32.xlu0 %v296, 4
    %v523 = vpop.permute.xlu0 %522
    %524 = vrot.lane.b32.xlu0 %v297, 4
    %v525 = vpop.permute.xlu0 %524
    %526 = vrot.lane.b32.xlu0 %v298, 4
    %v527 = vpop.permute.xlu0 %526
    %528 = vrot.lane.b32.xlu0 %v299, 4
    %v529 = vpop.permute.xlu0 %528
    %530 = vrot.lane.b32.xlu0 %v300, 4
    %v531 = vpop.permute.xlu0 %530
    %532 = vrot.lane.b32.xlu0 %v301, 4
    %v533 = vpop.permute.xlu0 %532
    %534 = vrot.lane.b32.xlu0 %v302, 4
    %v535 = vpop.permute.xlu0 %534
    %536 = vrot.lane.b32.xlu0 %v303, 4
    %v537 = vpop.permute.xlu0 %536
    %538 = vrot.lane.b32.xlu0 %v304, 4
    %v539 = vpop.permute.xlu0 %538
    %540 = vrot.lane.b32.xlu0 %v305, 4
    %v541 = vpop.permute.xlu0 %540
    %542 = vrot.lane.b32.xlu0 %v306, 4
    %v543 = vpop.permute.xlu0 %542
    %544 = vrot.lane.b32.xlu0 %v307, 4
    %v545 = vpop.permute.xlu0 %544
    %546 = vrot.lane.b32.xlu0 %v308, 4
    %v547 = vpop.permute.xlu0 %546
    %548 = vrot.lane.b32.xlu0 %v309, 4
    %v549 = vpop.permute.xlu0 %548
    %550 = vrot.lane.b32.xlu0 %v310, 4
    %v551 = vpop.permute.xlu0 %550
    %552 = vrot.lane.b32.xlu0 %v311, 4
    %v553 = vpop.permute.xlu0 %552
    %586 = vrot.lane.b32.xlu0 %v506, 8
    %v587 = vpop.permute.xlu0 %586
    %588 = vrot.lane.b32.xlu0 %v507, 8
    %v589 = vpop.permute.xlu0 %588
    %590 = vrot.lane.b32.xlu0 %v508, 8
    %v591 = vpop.permute.xlu0 %590
    %592 = vrot.lane.b32.xlu0 %v509, 8
    %v593 = vpop.permute.xlu0 %592
    %594 = vrot.lane.b32.xlu0 %v510, 8
    %v595 = vpop.permute.xlu0 %594
    %596 = vrot.lane.b32.xlu0 %v511, 8
    %v597 = vpop.permute.xlu0 %596
    %598 = vrot.lane.b32.xlu0 %v512, 8
    %v599 = vpop.permute.xlu0 %598
    %600 = vrot.lane.b32.xlu0 %v513, 8
    %v601 = vpop.permute.xlu0 %600
    %602 = vrot.lane.b32.xlu0 %v514, 8
    %v603 = vpop.permute.xlu0 %602
    %604 = vrot.lane.b32.xlu0 %v515, 8
    %v605 = vpop.permute.xlu0 %604
    %606 = vrot.lane.b32.xlu0 %v516, 8
    %v607 = vpop.permute.xlu0 %606
    %608 = vrot.lane.b32.xlu0 %v517, 8
    %v609 = vpop.permute.xlu0 %608
    %610 = vrot.lane.b32.xlu0 %v518, 8
    %v611 = vpop.permute.xlu0 %610
    %612 = vrot.lane.b32.xlu0 %v519, 8
    %v613 = vpop.permute.xlu0 %612
    %614 = vrot.lane.b32.xlu0 %v520, 8
    %v615 = vpop.permute.xlu0 %614
    %616 = vrot.lane.b32.xlu0 %v521, 8
    %v617 = vpop.permute.xlu0 %616
    %vm634 = vcmask 31744
    %v635 = vsel %vm634, %v458, %v523
    %v636 = vsel %vm634, %v459, %v525
    %v637 = vsel %vm634, %v460, %v527
    %v638 = vsel %vm634, %v461, %v529
    %v639 = vsel %vm634, %v462, %v531
    %v640 = vsel %vm634, %v463, %v533
    %v641 = vsel %vm634, %v464, %v535
    %v642 = vsel %vm634, %v465, %v537
    %v643 = vsel %vm634, %v466, %v539
    %v644 = vsel %vm634, %v467, %v541
    %v645 = vsel %vm634, %v468, %v543
    %v646 = vsel %vm634, %v469, %v545
    %v647 = vsel %vm634, %v470, %v547
    %v648 = vsel %vm634, %v471, %v549
    %v649 = vsel %vm634, %v472, %v551
    %v650 = vsel %vm634, %v473, %v553
    %vm651 = vcmask 64512
    %v652 = vsel %vm651, %v635, %v587
    %v653 = vsel %vm651, %v636, %v589
    %v654 = vsel %vm651, %v637, %v591
    %v655 = vsel %vm651, %v638, %v593
    %v656 = vsel %vm651, %v639, %v595
    %v657 = vsel %vm651, %v640, %v597
    %v658 = vsel %vm651, %v641, %v599
    %v659 = vsel %vm651, %v642, %v601
    %v660 = vsel %vm651, %v643, %v603
    %v661 = vsel %vm651, %v644, %v605
    %v662 = vsel %vm651, %v645, %v607
    %v663 = vsel %vm651, %v646, %v609
    %v664 = vsel %vm651, %v647, %v611
    %v665 = vsel %vm651, %v648, %v613
    %v666 = vsel %vm651, %v649, %v615
    %v667 = vsel %vm651, %v650, %v617
    %v668 = vld [vmem:[%s1] sm:$0xff]
    %v669 = vld [vmem:[%s1 + $0x8] sm:$0xf]
    %v670 = vld [vmem:[%s2] sm:$0x1]
    %v672 = vlaneseq
    %v673 = vshrl.u32 %v672, 7
    %v674 = vsub.s32 0, %v673
    %v675 = vrot.slane %v670, %v674
    %vm677 = vcmask 97280
    %v679 = vsel %vm677, %v652, 0
    %v682 = vsel %vm677, %v653, 0
    %v685 = vsel %vm677, %v654, 0
    %v688 = vsel %vm677, %v655, 0
    %v691 = vsel %vm677, %v656, 0
    %v694 = vsel %vm677, %v657, 0
    %v697 = vsel %vm677, %v658, 0
    %v700 = vsel %vm677, %v659, 0
    %v703 = vsel %vm677, %v660, 0
    %v706 = vsel %vm677, %v661, 0
    %v709 = vsel %vm677, %v662, 0
    %v712 = vsel %vm677, %v663, 0
    %v715 = vsel %vm677, %v664, 0
    %v718 = vsel %vm677, %v665, 0
    %v721 = vsel %vm677, %v666, 0
    %v724 = vsel %vm677, %v667, 0
    %vm726 = vcmask 1043456
    %v728 = vsel %vm726, %v669, 0
    %730 = vmatprep.subr.mxu0 0.0
    %731 = vmatpush1.msra.mxu0 %v668
    %732 = vmatprep.subr.mxu0 0.0
    %733 = vmatpush1.msra.mxu0 %v728
    %734 = vmatprep.subr.mxu0 0.0
    %735 = vmatpush1.msra.mxu0 0.0
    %736 = vmatprep.subr.mxu0 0.0
    %737 = vmatpush1.msra.mxu0 0.0
    %738 = vmatprep.subr.mxu0 0.0
    %739 = vmatpush1.msra.mxu0 0.0
    %740 = vmatprep.subr.mxu0 0.0
    %741 = vmatpush1.msra.mxu0 0.0
    %742 = vmatprep.subr.mxu0 0.0
    %743 = vmatpush1.msra.mxu0 0.0
    %744 = vmatprep.subr.mxu0 0.0
    %745 = vmatpush1.msra.mxu0 0.0
    %746 = vmatprep.subr.mxu0 0.0
    %747 = vmatpush1.msra.mxu0 0.0
    %748 = vmatprep.subr.mxu0 0.0
    %749 = vmatpush1.msra.mxu0 0.0
    %750 = vmatprep.subr.mxu0 0.0
    %751 = vmatpush1.msra.mxu0 0.0
    %752 = vmatprep.subr.mxu0 0.0
    %753 = vmatpush1.msra.mxu0 0.0
    %754 = vmatprep.subr.mxu0 0.0
    %755 = vmatpush1.msra.mxu0 0.0
    %756 = vmatprep.subr.mxu0 0.0
    %757 = vmatpush1.msra.mxu0 0.0
    %758 = vmatprep.subr.mxu0 0.0
    %759 = vmatpush1.msra.mxu0 0.0
    %760 = vmatprep.subr.mxu0 0.0
    %761 = vmatpush1.msra.mxu0 0.0
    %762 = vmatprep.subr.mxu0 0.0
    %763 = vmatpush1.msra.mxu0 0.0
    %764 = vmatprep.subr.mxu0 0.0
    %765 = vmatpush1.msra.mxu0 0.0
    %766 = vmatprep.subr.mxu0 0.0
    %767 = vmatpush1.msra.mxu0 0.0
    %768 = vmatprep.subr.mxu0 0.0
    %769 = vmatpush1.msra.mxu0 0.0
    %770 = vmatprep.subr.mxu0 0.0
    %771 = vmatpush1.msra.mxu0 0.0
    %772 = vmatprep.subr.mxu0 0.0
    %773 = vmatpush1.msra.mxu0 0.0
    %774 = vmatprep.subr.mxu0 0.0
    %775 = vmatpush1.msra.mxu0 0.0
    %776 = vmatprep.subr.mxu0 0.0
    %777 = vmatpush1.msra.mxu0 0.0
    %778 = vmatprep.subr.mxu0 0.0
    %779 = vmatpush1.msra.mxu0 0.0
    %780 = vmatprep.subr.mxu0 0.0
    %781 = vmatpush1.msra.mxu0 0.0
    %782 = vmatprep.subr.mxu0 0.0
    %783 = vmatpush1.msra.mxu0 0.0
    %784 = vmatprep.subr.mxu0 0.0
    %785 = vmatpush1.msra.mxu0 0.0
    %786 = vmatprep.subr.mxu0 0.0
    %787 = vmatpush1.msra.mxu0 0.0
    %788 = vmatprep.subr.mxu0 0.0
    %789 = vmatpush1.msra.mxu0 0.0
    %790 = vmatprep.subr.mxu0 0.0
    %791 = vmatpush1.msra.mxu0 0.0
    %792 = vmatprep.subr.mxu0 0.0
    %793 = vmatpush1.msra.mxu0 0.0
    %794 = vmatprep.mubr.f32.mxu0 0.0
    %795 = vmatmul.mubr.f32.gmra.mrb[0].mxu0 %v679
    %v796 = vpop.f32.mrb[0].mxu0
    %v797 = vadd.f32 %v675, %v796
    %v798 = vpop.f32.mrb[0].mxu0
    %799 = vmatprep.mubr.f32.mxu0 0.0
    %800 = vmatmul.mubr.f32.gmra.mrb[0].mxu0 %v682
    %v801 = vpop.f32.mrb[0].mxu0
    %v802 = vadd.f32 %v675, %v801
    %v803 = vpop.f32.mrb[0].mxu0
    %804 = vmatprep.mubr.f32.mxu0 0.0
    %805 = vmatmul.mubr.f32.gmra.mrb[0].mxu0 %v685
    %v806 = vpop.f32.mrb[0].mxu0
    %v807 = vadd.f32 %v675, %v806
    %v808 = vpop.f32.mrb[0].mxu0
    %809 = vmatprep.mubr.f32.mxu0 0.0
    %810 = vmatmul.mubr.f32.gmra.mrb[0].mxu0 %v688
    %v811 = vpop.f32.mrb[0].mxu0
    %v812 = vadd.f32 %v675, %v811
    %v813 = vpop.f32.mrb[0].mxu0
    %814 = vmatprep.mubr.f32.mxu0 0.0
    %815 = vmatmul.mubr.f32.gmra.mrb[0].mxu0 %v691
    %v816 = vpop.f32.mrb[0].mxu0
    %v817 = vadd.f32 %v675, %v816
    %v818 = vpop.f32.mrb[0].mxu0
    %819 = vmatprep.mubr.f32.mxu0 0.0
    %820 = vmatmul.mubr.f32.gmra.mrb[0].mxu0 %v694
    %v821 = vpop.f32.mrb[0].mxu0
    %v822 = vadd.f32 %v675, %v821
    %v823 = vpop.f32.mrb[0].mxu0
    %824 = vmatprep.mubr.f32.mxu0 0.0
    %825 = vmatmul.mubr.f32.gmra.mrb[0].mxu0 %v697
    %v826 = vpop.f32.mrb[0].mxu0
    %v827 = vadd.f32 %v675, %v826
    %v828 = vpop.f32.mrb[0].mxu0
    %829 = vmatprep.mubr.f32.mxu0 0.0
    %830 = vmatmul.mubr.f32.gmra.mrb[0].mxu0 %v700
    %v831 = vpop.f32.mrb[0].mxu0
    %v832 = vadd.f32 %v675, %v831
    %v833 = vpop.f32.mrb[0].mxu0
    %834 = vmatprep.mubr.f32.mxu0 0.0
    %835 = vmatmul.mubr.f32.gmra.mrb[0].mxu0 %v703
    %v836 = vpop.f32.mrb[0].mxu0
    %v837 = vadd.f32 %v675, %v836
    %v838 = vpop.f32.mrb[0].mxu0
    %839 = vmatprep.mubr.f32.mxu0 0.0
    %840 = vmatmul.mubr.f32.gmra.mrb[0].mxu0 %v706
    %v841 = vpop.f32.mrb[0].mxu0
    %v842 = vadd.f32 %v675, %v841
    %v843 = vpop.f32.mrb[0].mxu0
    %844 = vmatprep.mubr.f32.mxu0 0.0
    %845 = vmatmul.mubr.f32.gmra.mrb[0].mxu0 %v709
    %v846 = vpop.f32.mrb[0].mxu0
    %v847 = vadd.f32 %v675, %v846
    %v848 = vpop.f32.mrb[0].mxu0
    %849 = vmatprep.mubr.f32.mxu0 0.0
    %850 = vmatmul.mubr.f32.gmra.mrb[0].mxu0 %v712
    %v851 = vpop.f32.mrb[0].mxu0
    %v852 = vadd.f32 %v675, %v851
    %v853 = vpop.f32.mrb[0].mxu0
    %854 = vmatprep.mubr.f32.mxu0 0.0
    %855 = vmatmul.mubr.f32.gmra.mrb[0].mxu0 %v715
    %v856 = vpop.f32.mrb[0].mxu0
    %v857 = vadd.f32 %v675, %v856
    %v858 = vpop.f32.mrb[0].mxu0
    %859 = vmatprep.mubr.f32.mxu0 0.0
    %860 = vmatmul.mubr.f32.gmra.mrb[0].mxu0 %v718
    %v861 = vpop.f32.mrb[0].mxu0
    %v862 = vadd.f32 %v675, %v861
    %v863 = vpop.f32.mrb[0].mxu0
    %864 = vmatprep.mubr.f32.mxu0 0.0
    %865 = vmatmul.mubr.f32.gmra.mrb[0].mxu0 %v721
    %v866 = vpop.f32.mrb[0].mxu0
    %v867 = vadd.f32 %v675, %v866
    %v868 = vpop.f32.mrb[0].mxu0
    %869 = vmatprep.mubr.f32.mxu0 0.0
    %870 = vmatmul.mubr.f32.gmra.mrb[0].mxu0 %v724
    %v871 = vpop.f32.mrb[0].mxu0
    %v872 = vadd.f32 %v675, %v871
    %v873 = vpop.f32.mrb[0].mxu0
    %874 = vdwg.mxu0
    %vm875 = vcmp.gt.f32.partialorder %v797, 0.0
    %vm876 = vcmp.gt.f32.partialorder %v802, 0.0
    %vm877 = vcmp.gt.f32.partialorder %v807, 0.0
    %vm878 = vcmp.gt.f32.partialorder %v812, 0.0
    %vm879 = vcmp.gt.f32.partialorder %v817, 0.0
    %vm880 = vcmp.gt.f32.partialorder %v822, 0.0
    %vm881 = vcmp.gt.f32.partialorder %v827, 0.0
    %vm882 = vcmp.gt.f32.partialorder %v832, 0.0
    %vm883 = vcmp.gt.f32.partialorder %v837, 0.0
    %vm884 = vcmp.gt.f32.partialorder %v842, 0.0
    %vm885 = vcmp.gt.f32.partialorder %v847, 0.0
    %vm886 = vcmp.gt.f32.partialorder %v852, 0.0
    %vm887 = vcmp.gt.f32.partialorder %v857, 0.0
    %vm888 = vcmp.gt.f32.partialorder %v862, 0.0
    %vm889 = vcmp.gt.f32.partialorder %v867, 0.0
    %vm890 = vcmp.gt.f32.partialorder %v872, 0.0
    %v891 = vmul.f32 %v797, 0.2
    %v892 = vmul.f32 %v802, 0.2
    %v893 = vmul.f32 %v807, 0.2
    %v894 = vmul.f32 %v812, 0.2
    %v895 = vmul.f32 %v817, 0.2
    %v896 = vmul.f32 %v822, 0.2
    %v897 = vmul.f32 %v827, 0.2
    %v898 = vmul.f32 %v832, 0.2
    %v899 = vmul.f32 %v837, 0.2
    %v900 = vmul.f32 %v842, 0.2
    %v901 = vmul.f32 %v847, 0.2
    %v902 = vmul.f32 %v852, 0.2
    %v903 = vmul.f32 %v857, 0.2
    %v904 = vmul.f32 %v862, 0.2
    %v905 = vmul.f32 %v867, 0.2
    %v906 = vmul.f32 %v872, 0.2
    %v907 = vsel %vm875, %v797, %v891
    %v908 = vsel %vm876, %v802, %v892
    %v909 = vsel %vm877, %v807, %v893
    %v910 = vsel %vm878, %v812, %v894
    %v911 = vsel %vm879, %v817, %v895
    %v912 = vsel %vm880, %v822, %v896
    %v913 = vsel %vm881, %v827, %v897
    %v914 = vsel %vm882, %v832, %v898
    %v915 = vsel %vm883, %v837, %v899
    %v916 = vsel %vm884, %v842, %v900
    %v917 = vsel %vm885, %v847, %v901
    %v918 = vsel %vm886, %v852, %v902
    %v919 = vsel %vm887, %v857, %v903
    %v920 = vsel %vm888, %v862, %v904
    %v921 = vsel %vm889, %v867, %v905
    %v922 = vsel %vm890, %v872, %v906
    %v939 = vrot.slane %v907, 7
    %v940 = vrot.slane %v908, 7
    %v941 = vsel %vm328, %v939, %v940
    %v942 = vrot.slane %v909, 7
    %v943 = vsel %vm328, %v940, %v942
    %v944 = vrot.slane %v910, 7
    %v945 = vsel %vm328, %v942, %v944
    %v946 = vrot.slane %v911, 7
    %v947 = vsel %vm328, %v944, %v946
    %v948 = vrot.slane %v912, 7
    %v949 = vsel %vm328, %v946, %v948
    %v950 = vrot.slane %v913, 7
    %v951 = vsel %vm328, %v948, %v950
    %v952 = vrot.slane %v914, 7
    %v953 = vsel %vm328, %v950, %v952
    %v954 = vrot.slane %v915, 7
    %v955 = vsel %vm328, %v952, %v954
    %v956 = vrot.slane %v916, 7
    %v957 = vsel %vm328, %v954, %v956
    %v958 = vrot.slane %v917, 7
    %v959 = vsel %vm328, %v956, %v958
    %v960 = vrot.slane %v918, 7
    %v961 = vsel %vm328, %v958, %v960
    %v962 = vrot.slane %v919, 7
    %v963 = vsel %vm328, %v960, %v962
    %v964 = vrot.slane %v920, 7
    %v965 = vsel %vm328, %v962, %v964
    %v966 = vrot.slane %v921, 7
    %v967 = vsel %vm328, %v964, %v966
    %v968 = vrot.slane %v922, 7
    %v969 = vsel %vm328, %v966, %v968
    %v986 = vsel %vm328, 0.0, %v939
    %v987 = vrot.slane %v907, 1
    %v988 = vrot.slane %v908, 1
    %v989 = vsel %vm377, %v987, %v988
    %v990 = vrot.slane %v909, 1
    %v991 = vsel %vm377, %v988, %v990
    %v992 = vrot.slane %v910, 1
    %v993 = vsel %vm377, %v990, %v992
    %v994 = vrot.slane %v911, 1
    %v995 = vsel %vm377, %v992, %v994
    %v996 = vrot.slane %v912, 1
    %v997 = vsel %vm377, %v994, %v996
    %v998 = vrot.slane %v913, 1
    %v999 = vsel %vm377, %v996, %v998
    %v1000 = vrot.slane %v914, 1
    %v1001 = vsel %vm377, %v998, %v1000
    %v1002 = vrot.slane %v915, 1
    %v1003 = vsel %vm377, %v1000, %v1002
    %v1004 = vrot.slane %v916, 1
    %v1005 = vsel %vm377, %v1002, %v1004
    %v1006 = vrot.slane %v917, 1
    %v1007 = vsel %vm377, %v1004, %v1006
    %v1008 = vrot.slane %v918, 1
    %v1009 = vsel %vm377, %v1006, %v1008
    %v1010 = vrot.slane %v919, 1
    %v1011 = vsel %vm377, %v1008, %v1010
    %v1012 = vrot.slane %v920, 1
    %v1013 = vsel %vm377, %v1010, %v1012
    %v1014 = vrot.slane %v921, 1
    %v1015 = vsel %vm377, %v1012, %v1014
    %v1016 = vrot.slane %v922, 1
    %v1017 = vsel %vm377, %v1014, %v1016
    %v1034 = vsel %vm377, %v1016, 0.0
    %v1035 = vsel %vm442, %v986, 0.0
    %v1036 = vsel %vm443, %v941, 0.0
    %v1037 = vsel %vm444, %v943, 0.0
    %v1038 = vsel %vm445, %v945, 0.0
    %v1039 = vsel %vm446, %v947, 0.0
    %v1040 = vsel %vm447, %v949, 0.0
    %v1041 = vsel %vm448, %v951, 0.0
    %v1042 = vsel %vm449, %v953, 0.0
    %v1043 = vsel %vm450, %v955, 0.0
    %v1044 = vsel %vm451, %v957, 0.0
    %v1045 = vsel %vm452, %v959, 0.0
    %v1046 = vsel %vm453, %v961, 0.0
    %v1047 = vsel %vm454, %v963, 0.0
    %v1048 = vsel %vm455, %v965, 0.0
    %v1049 = vsel %vm456, %v967, 0.0
    %v1050 = vsel %vm457, %v969, 0.0
    %v1051 = vsel %vm490, %v989, 0.0
    %v1052 = vsel %vm491, %v991, 0.0
    %v1053 = vsel %vm492, %v993, 0.0
    %v1054 = vsel %vm493, %v995, 0.0
    %v1055 = vsel %vm494, %v997, 0.0
    %v1056 = vsel %vm495, %v999, 0.0
    %v1057 = vsel %vm496, %v1001, 0.0
    %v1058 = vsel %vm497, %v1003, 0.0
    %v1059 = vsel %vm498, %v1005, 0.0
    %v1060 = vsel %vm499, %v1007, 0.0
    %v1061 = vsel %vm500, %v1009, 0.0
    %v1062 = vsel %vm501, %v1011, 0.0
    %v1063 = vsel %vm502, %v1013, 0.0
    %v1064 = vsel %vm503, %v1015, 0.0
    %v1065 = vsel %vm504, %v1017, 0.0
    %v1066 = vsel %vm505, %v1034, 0.0
    %1067 = vrot.lane.b32.xlu0 %v907, 64
    %v1068 = vpop.permute.xlu0 %1067
    %1069 = vrot.lane.b32.xlu0 %v908, 64
    %v1070 = vpop.permute.xlu0 %1069
    %1071 = vrot.lane.b32.xlu0 %v909, 64
    %v1072 = vpop.permute.xlu0 %1071
    %1073 = vrot.lane.b32.xlu0 %v910, 64
    %v1074 = vpop.permute.xlu0 %1073
    %1075 = vrot.lane.b32.xlu0 %v911, 64
    %v1076 = vpop.permute.xlu0 %1075
    %1077 = vrot.lane.b32.xlu0 %v912, 64
    %v1078 = vpop.permute.xlu0 %1077
    %1079 = vrot.lane.b32.xlu0 %v913, 64
    %v1080 = vpop.permute.xlu0 %1079
    %1081 = vrot.lane.b32.xlu0 %v914, 64
    %v1082 = vpop.permute.xlu0 %1081
    %1083 = vrot.lane.b32.xlu0 %v915, 64
    %v1084 = vpop.permute.xlu0 %1083
    %1085 = vrot.lane.b32.xlu0 %v916, 64
    %v1086 = vpop.permute.xlu0 %1085
    %1087 = vrot.lane.b32.xlu0 %v917, 64
    %v1088 = vpop.permute.xlu0 %1087
    %1089 = vrot.lane.b32.xlu0 %v918, 64
    %v1090 = vpop.permute.xlu0 %1089
    %1091 = vrot.lane.b32.xlu0 %v919, 64
    %v1092 = vpop.permute.xlu0 %1091
    %1093 = vrot.lane.b32.xlu0 %v920, 64
    %v1094 = vpop.permute.xlu0 %1093
    %1095 = vrot.lane.b32.xlu0 %v921, 64
    %v1096 = vpop.permute.xlu0 %1095
    %1097 = vrot.lane.b32.xlu0 %v922, 64
    %v1098 = vpop.permute.xlu0 %1097
    %vm1115 = vcmask 523264
    %v1116 = vsel %vm1115, %v1035, %v1068
    %v1117 = vsel %vm1115, %v1036, %v1070
    %v1118 = vsel %vm1115, %v1037, %v1072
    %v1119 = vsel %vm1115, %v1038, %v1074
    %v1120 = vsel %vm1115, %v1039, %v1076
    %v1121 = vsel %vm1115, %v1040, %v1078
    %v1122 = vsel %vm1115, %v1041, %v1080
    %v1123 = vsel %vm1115, %v1042, %v1082
    %v1124 = vsel %vm1115, %v1043, %v1084
    %v1125 = vsel %vm1115, %v1044, %v1086
    %v1126 = vsel %vm1115, %v1045, %v1088
    %v1127 = vsel %vm1115, %v1046, %v1090
    %v1128 = vsel %vm1115, %v1047, %v1092
    %v1129 = vsel %vm1115, %v1048, %v1094
    %v1130 = vsel %vm1115, %v1049, %v1096
    %v1131 = vsel %vm1115, %v1050, %v1098
    %v1132 = vld [vmem:[#allocation2] sm:$0xff]
    %v1133 = vld [vmem:[#allocation2 + $0x8] sm:$0xff]
    %v1134 = vld [vmem:[#allocation2 + $0x10] sm:$0xff]
    %v1135 = vld [vmem:[#allocation2 + $0x18] sm:$0xff]
    %v1136 = vld [vmem:[#allocation2 + $0x20] sm:$0xff]
    %v1137 = vld [vmem:[#allocation2 + $0x28] sm:$0xff]
    %v1138 = vld [vmem:[#allocation2 + $0x30] sm:$0xff]
    %v1139 = vld [vmem:[#allocation2 + $0x38] sm:$0xff]
    %v1140 = vld [vmem:[#allocation2 + $0x40] sm:$0xff]
    %v1141 = vld [vmem:[#allocation2 + $0x48] sm:$0xff]
    %v1142 = vld [vmem:[#allocation2 + $0x50] sm:$0xff]
    %v1143 = vld [vmem:[#allocation2 + $0x58] sm:$0xff]
    %v1144 = vld [vmem:[#allocation2 + $0x60] sm:$0xff]
    %v1145 = vld [vmem:[#allocation2 + $0x68] sm:$0xff]
    %v1146 = vld [vmem:[#allocation2 + $0x70] sm:$0xff]
    %v1147 = vld [vmem:[#allocation2 + $0x78] sm:$0xff]
    %v1148 = vld [vmem:[#allocation2 + $0x80] sm:$0xff]
    %v1149 = vld [vmem:[#allocation2 + $0x88] sm:$0xff]
    %v1150 = vld [vmem:[#allocation2 + $0x90] sm:$0xff]
    %v1151 = vld [vmem:[#allocation2 + $0x98] sm:$0xff]
    %v1152 = vld [vmem:[#allocation2 + $0xa0] sm:$0xff]
    %v1153 = vld [vmem:[#allocation2 + $0xa8] sm:$0xff]
    %v1154 = vld [vmem:[#allocation2 + $0xb0] sm:$0xff]
    %v1155 = vld [vmem:[#allocation2 + $0xb8] sm:$0xff]
    %v1156 = vld [vmem:[%s4] sm:$0x1]
    %v1158 = vlaneseq
    %v1159 = vshrl.u32 %v1158, 7
    %v1160 = vsub.s32 0, %v1159
    %v1161 = vrot.slane %v1156, %v1160
    %v1164 = vsel %vm1115, %v1051, 0
    %v1167 = vsel %vm1115, %v1052, 0
    %v1170 = vsel %vm1115, %v1053, 0
    %v1173 = vsel %vm1115, %v1054, 0
    %v1176 = vsel %vm1115, %v1055, 0
    %v1179 = vsel %vm1115, %v1056, 0
    %v1182 = vsel %vm1115, %v1057, 0
    %v1185 = vsel %vm1115, %v1058, 0
    %v1188 = vsel %vm1115, %v1059, 0
    %v1191 = vsel %vm1115, %v1060, 0
    %v1194 = vsel %vm1115, %v1061, 0
    %v1197 = vsel %vm1115, %v1062, 0
    %v1200 = vsel %vm1115, %v1063, 0
    %v1203 = vsel %vm1115, %v1064, 0
    %v1206 = vsel %vm1115, %v1065, 0
    %v1209 = vsel %vm1115, %v1066, 0
    %1211 = vmatprep.subr.mxu0 0.0
    %1212 = vmatpush1.msra.mxu0 %v1132
    %1213 = vmatprep.subr.mxu0 0.0
    %1214 = vmatpush1.msra.mxu0 %v1133
    %1215 = vmatprep.subr.mxu0 0.0
    %1216 = vmatpush1.msra.mxu0 %v1134
    %1217 = vmatprep.subr.mxu0 0.0
    %1218 = vmatpush1.msra.mxu0 %v1135
    %1219 = vmatprep.subr.mxu0 0.0
    %1220 = vmatpush1.msra.mxu0 %v1136
    %1221 = vmatprep.subr.mxu0 0.0
    %1222 = vmatpush1.msra.mxu0 %v1137
    %1223 = vmatprep.subr.mxu0 0.0
    %1224 = vmatpush1.msra.mxu0 %v1138
    %1225 = vmatprep.subr.mxu0 0.0
    %1226 = vmatpush1.msra.mxu0 %v1139
    %1227 = vmatprep.subr.mxu0 0.0
    %1228 = vmatpush1.msra.mxu0 %v1140
    %1229 = vmatprep.subr.mxu0 0.0
    %1230 = vmatpush1.msra.mxu0 %v1141
    %1231 = vmatprep.subr.mxu0 0.0
    %1232 = vmatpush1.msra.mxu0 %v1142
    %1233 = vmatprep.subr.mxu0 0.0
    %1234 = vmatpush1.msra.mxu0 %v1143
    %1235 = vmatprep.subr.mxu0 0.0
    %1236 = vmatpush1.msra.mxu0 %v1144
    %1237 = vmatprep.subr.mxu0 0.0
    %1238 = vmatpush1.msra.mxu0 %v1145
    %1239 = vmatprep.subr.mxu0 0.0
    %1240 = vmatpush1.msra.mxu0 %v1146
    %1241 = vmatprep.subr.mxu0 0.0
    %1242 = vmatpush1.msra.mxu0 %v1147
    %1243 = vmatprep.subr.mxu0 0.0
    %1244 = vmatpush1.msra.mxu0 %v1148
    %1245 = vmatprep.subr.mxu0 0.0
    %1246 = vmatpush1.msra.mxu0 %v1149
    %1247 = vmatprep.subr.mxu0 0.0
    %1248 = vmatpush1.msra.mxu0 %v1150
    %1249 = vmatprep.subr.mxu0 0.0
    %1250 = vmatpush1.msra.mxu0 %v1151
    %1251 = vmatprep.subr.mxu0 0.0
    %1252 = vmatpush1.msra.mxu0 %v1152
    %1253 = vmatprep.subr.mxu0 0.0
    %1254 = vmatpush1.msra.mxu0 %v1153
    %1255 = vmatprep.subr.mxu0 0.0
    %1256 = vmatpush1.msra.mxu0 %v1154
    %1257 = vmatprep.subr.mxu0 0.0
    %1258 = vmatpush1.msra.mxu0 %v1155
    %1259 = vmatprep.subr.mxu0 0.0
    %1260 = vmatpush1.msra.mxu0 0.0
    %1261 = vmatprep.subr.mxu0 0.0
    %1262 = vmatpush1.msra.mxu0 0.0
    %1263 = vmatprep.subr.mxu0 0.0
    %1264 = vmatpush1.msra.mxu0 0.0
    %1265 = vmatprep.subr.mxu0 0.0
    %1266 = vmatpush1.msra.mxu0 0.0
    %1267 = vmatprep.subr.mxu0 0.0
    %1268 = vmatpush1.msra.mxu0 0.0
    %1269 = vmatprep.subr.mxu0 0.0
    %1270 = vmatpush1.msra.mxu0 0.0
    %1271 = vmatprep.subr.mxu0 0.0
    %1272 = vmatpush1.msra.mxu0 0.0
    %1273 = vmatprep.subr.mxu0 0.0
    %1274 = vmatpush1.msra.mxu0 0.0
    %1275 = vmatprep.mubr.f32.mxu0 %v1164
    %1276 = vmatmul.mubr.f32.gmra.mrb[0].mxu0 %v1116
    %v1277 = vpop.f32.mrb[0].mxu0
    %v1278 = vadd.f32 %v1161, %v1277
    %v1279 = vpop.f32.mrb[0].mxu0
    %1280 = vmatprep.mubr.f32.mxu0 %v1167
    %1281 = vmatmul.mubr.f32.gmra.mrb[0].mxu0 %v1117
    %v1282 = vpop.f32.mrb[0].mxu0
    %v1283 = vadd.f32 %v1161, %v1282
    %v1284 = vpop.f32.mrb[0].mxu0
    %1285 = vmatprep.mubr.f32.mxu0 %v1170
    %1286 = vmatmul.mubr.f32.gmra.mrb[0].mxu0 %v1118
    %v1287 = vpop.f32.mrb[0].mxu0
    %v1288 = vadd.f32 %v1161, %v1287
    %v1289 = vpop.f32.mrb[0].mxu0
    %1290 = vmatprep.mubr.f32.mxu0 %v1173
    %1291 = vmatmul.mubr.f32.gmra.mrb[0].mxu0 %v1119
    %v1292 = vpop.f32.mrb[0].mxu0
    %v1293 = vadd.f32 %v1161, %v1292
    %v1294 = vpop.f32.mrb[0].mxu0
    %1295 = vmatprep.mubr.f32.mxu0 %v1176
    %1296 = vmatmul.mubr.f32.gmra.mrb[0].mxu0 %v1120
    %v1297 = vpop.f32.mrb[0].mxu0
    %v1298 = vadd.f32 %v1161, %v1297
    %v1299 = vpop.f32.mrb[0].mxu0
    %1300 = vmatprep.mubr.f32.mxu0 %v1179
    %1301 = vmatmul.mubr.f32.gmra.mrb[0].mxu0 %v1121
    %v1302 = vpop.f32.mrb[0].mxu0
    %v1303 = vadd.f32 %v1161, %v1302
    %v1304 = vpop.f32.mrb[0].mxu0
    %1305 = vmatprep.mubr.f32.mxu0 %v1182
    %1306 = vmatmul.mubr.f32.gmra.mrb[0].mxu0 %v1122
    %v1307 = vpop.f32.mrb[0].mxu0
    %v1308 = vadd.f32 %v1161, %v1307
    %v1309 = vpop.f32.mrb[0].mxu0
    %1310 = vmatprep.mubr.f32.mxu0 %v1185
    %1311 = vmatmul.mubr.f32.gmra.mrb[0].mxu0 %v1123
    %v1312 = vpop.f32.mrb[0].mxu0
    %v1313 = vadd.f32 %v1161, %v1312
    %v1314 = vpop.f32.mrb[0].mxu0
    %1315 = vmatprep.mubr.f32.mxu0 %v1188
    %1316 = vmatmul.mubr.f32.gmra.mrb[0].mxu0 %v1124
    %v1317 = vpop.f32.mrb[0].mxu0
    %v1318 = vadd.f32 %v1161, %v1317
    %v1319 = vpop.f32.mrb[0].mxu0
    %1320 = vmatprep.mubr.f32.mxu0 %v1191
    %1321 = vmatmul.mubr.f32.gmra.mrb[0].mxu0 %v1125
    %v1322 = vpop.f32.mrb[0].mxu0
    %v1323 = vadd.f32 %v1161, %v1322
    %v1324 = vpop.f32.mrb[0].mxu0
    %1325 = vmatprep.mubr.f32.mxu0 %v1194
    %1326 = vmatmul.mubr.f32.gmra.mrb[0].mxu0 %v1126
    %v1327 = vpop.f32.mrb[0].mxu0
    %v1328 = vadd.f32 %v1161, %v1327
    %v1329 = vpop.f32.mrb[0].mxu0
    %1330 = vmatprep.mubr.f32.mxu0 %v1197
    %1331 = vmatmul.mubr.f32.gmra.mrb[0].mxu0 %v1127
    %v1332 = vpop.f32.mrb[0].mxu0
    %v1333 = vadd.f32 %v1161, %v1332
    %v1334 = vpop.f32.mrb[0].mxu0
    %1335 = vmatprep.mubr.f32.mxu0 %v1200
    %1336 = vmatmul.mubr.f32.gmra.mrb[0].mxu0 %v1128
    %v1337 = vpop.f32.mrb[0].mxu0
    %v1338 = vadd.f32 %v1161, %v1337
    %v1339 = vpop.f32.mrb[0].mxu0
    %1340 = vmatprep.mubr.f32.mxu0 %v1203
    %1341 = vmatmul.mubr.f32.gmra.mrb[0].mxu0 %v1129
    %v1342 = vpop.f32.mrb[0].mxu0
    %v1343 = vadd.f32 %v1161, %v1342
    %v1344 = vpop.f32.mrb[0].mxu0
    %1345 = vmatprep.mubr.f32.mxu0 %v1206
    %1346 = vmatmul.mubr.f32.gmra.mrb[0].mxu0 %v1130
    %v1347 = vpop.f32.mrb[0].mxu0
    %v1348 = vadd.f32 %v1161, %v1347
    %v1349 = vpop.f32.mrb[0].mxu0
    %1350 = vmatprep.mubr.f32.mxu0 %v1209
    %1351 = vmatmul.mubr.f32.gmra.mrb[0].mxu0 %v1131
    %v1352 = vpop.f32.mrb[0].mxu0
    %v1353 = vadd.f32 %v1161, %v1352
    %v1354 = vpop.f32.mrb[0].mxu0
    %1355 = vdwg.mxu0
    %vm1356 = vcmp.gt.f32.partialorder %v1278, 0.0
    %vm1357 = vcmp.gt.f32.partialorder %v1283, 0.0
    %vm1358 = vcmp.gt.f32.partialorder %v1288, 0.0
    %vm1359 = vcmp.gt.f32.partialorder %v1293, 0.0
    %vm1360 = vcmp.gt.f32.partialorder %v1298, 0.0
    %vm1361 = vcmp.gt.f32.partialorder %v1303, 0.0
    %vm1362 = vcmp.gt.f32.partialorder %v1308, 0.0
    %vm1363 = vcmp.gt.f32.partialorder %v1313, 0.0
    %vm1364 = vcmp.gt.f32.partialorder %v1318, 0.0
    %vm1365 = vcmp.gt.f32.partialorder %v1323, 0.0
    %vm1366 = vcmp.gt.f32.partialorder %v1328, 0.0
    %vm1367 = vcmp.gt.f32.partialorder %v1333, 0.0
    %vm1368 = vcmp.gt.f32.partialorder %v1338, 0.0
    %vm1369 = vcmp.gt.f32.partialorder %v1343, 0.0
    %vm1370 = vcmp.gt.f32.partialorder %v1348, 0.0
    %vm1371 = vcmp.gt.f32.partialorder %v1353, 0.0
    %v1372 = vmul.f32 %v1278, 0.2
    %v1373 = vmul.f32 %v1283, 0.2
    %v1374 = vmul.f32 %v1288, 0.2
    %v1375 = vmul.f32 %v1293, 0.2
    %v1376 = vmul.f32 %v1298, 0.2
    %v1377 = vmul.f32 %v1303, 0.2
    %v1378 = vmul.f32 %v1308, 0.2
    %v1379 = vmul.f32 %v1313, 0.2
    %v1380 = vmul.f32 %v1318, 0.2
    %v1381 = vmul.f32 %v1323, 0.2
    %v1382 = vmul.f32 %v1328, 0.2
    %v1383 = vmul.f32 %v1333, 0.2
    %v1384 = vmul.f32 %v1338, 0.2
    %v1385 = vmul.f32 %v1343, 0.2
    %v1386 = vmul.f32 %v1348, 0.2
    %v1387 = vmul.f32 %v1353, 0.2
    %v1388 = vsel %vm1356, %v1278, %v1372
    %v1389 = vsel %vm1357, %v1283, %v1373
    %v1390 = vsel %vm1358, %v1288, %v1374
    %v1391 = vsel %vm1359, %v1293, %v1375
    %v1392 = vsel %vm1360, %v1298, %v1376
    %v1393 = vsel %vm1361, %v1303, %v1377
    %v1394 = vsel %vm1362, %v1308, %v1378
    %v1395 = vsel %vm1363, %v1313, %v1379
    %v1396 = vsel %vm1364, %v1318, %v1380
    %v1397 = vsel %vm1365, %v1323, %v1381
    %v1398 = vsel %vm1366, %v1328, %v1382
    %v1399 = vsel %vm1367, %v1333, %v1383
    %v1400 = vsel %vm1368, %v1338, %v1384
    %v1401 = vsel %vm1369, %v1343, %v1385
    %v1402 = vsel %vm1370, %v1348, %v1386
    %v1403 = vsel %vm1371, %v1353, %v1387
    %v1420 = vrot.slane %v1388, 7
    %v1421 = vrot.slane %v1389, 7
    %v1422 = vsel %vm328, %v1420, %v1421
    %v1423 = vrot.slane %v1390, 7
    %v1424 = vsel %vm328, %v1421, %v1423
    %v1425 = vrot.slane %v1391, 7
    %v1426 = vsel %vm328, %v1423, %v1425
    %v1427 = vrot.slane %v1392, 7
    %v1428 = vsel %vm328, %v1425, %v1427
    %v1429 = vrot.slane %v1393, 7
    %v1430 = vsel %vm328, %v1427, %v1429
    %v1431 = vrot.slane %v1394, 7
    %v1432 = vsel %vm328, %v1429, %v1431
    %v1433 = vrot.slane %v1395, 7
    %v1434 = vsel %vm328, %v1431, %v1433
    %v1435 = vrot.slane %v1396, 7
    %v1436 = vsel %vm328, %v1433, %v1435
    %v1437 = vrot.slane %v1397, 7
    %v1438 = vsel %vm328, %v1435, %v1437
    %v1439 = vrot.slane %v1398, 7
    %v1440 = vsel %vm328, %v1437, %v1439
    %v1441 = vrot.slane %v1399, 7
    %v1442 = vsel %vm328, %v1439, %v1441
    %v1443 = vrot.slane %v1400, 7
    %v1444 = vsel %vm328, %v1441, %v1443
    %v1445 = vrot.slane %v1401, 7
    %v1446 = vsel %vm328, %v1443, %v1445
    %v1447 = vrot.slane %v1402, 7
    %v1448 = vsel %vm328, %v1445, %v1447
    %v1449 = vrot.slane %v1403, 7
    %v1450 = vsel %vm328, %v1447, %v1449
    %v1467 = vsel %vm328, 0.0, %v1420
    %v1468 = vrot.slane %v1388, 1
    %v1469 = vrot.slane %v1389, 1
    %v1470 = vsel %vm377, %v1468, %v1469
    %v1471 = vrot.slane %v1390, 1
    %v1472 = vsel %vm377, %v1469, %v1471
    %v1473 = vrot.slane %v1391, 1
    %v1474 = vsel %vm377, %v1471, %v1473
    %v1475 = vrot.slane %v1392, 1
    %v1476 = vsel %vm377, %v1473, %v1475
    %v1477 = vrot.slane %v1393, 1
    %v1478 = vsel %vm377, %v1475, %v1477
    %v1479 = vrot.slane %v1394, 1
    %v1480 = vsel %vm377, %v1477, %v1479
    %v1481 = vrot.slane %v1395, 1
    %v1482 = vsel %vm377, %v1479, %v1481
    %v1483 = vrot.slane %v1396, 1
    %v1484 = vsel %vm377, %v1481, %v1483
    %v1485 = vrot.slane %v1397, 1
    %v1486 = vsel %vm377, %v1483, %v1485
    %v1487 = vrot.slane %v1398, 1
    %v1488 = vsel %vm377, %v1485, %v1487
    %v1489 = vrot.slane %v1399, 1
    %v1490 = vsel %vm377, %v1487, %v1489
    %v1491 = vrot.slane %v1400, 1
    %v1492 = vsel %vm377, %v1489, %v1491
    %v1493 = vrot.slane %v1401, 1
    %v1494 = vsel %vm377, %v1491, %v1493
    %v1495 = vrot.slane %v1402, 1
    %v1496 = vsel %vm377, %v1493, %v1495
    %v1497 = vrot.slane %v1403, 1
    %v1498 = vsel %vm377, %v1495, %v1497
    %v1515 = vsel %vm377, %v1497, 0.0
    %v1516 = vsel %vm442, %v1467, 0.0
    %v1517 = vsel %vm443, %v1422, 0.0
    %v1518 = vsel %vm444, %v1424, 0.0
    %v1519 = vsel %vm445, %v1426, 0.0
    %v1520 = vsel %vm446, %v1428, 0.0
    %v1521 = vsel %vm447, %v1430, 0.0
    %v1522 = vsel %vm448, %v1432, 0.0
    %v1523 = vsel %vm449, %v1434, 0.0
    %v1524 = vsel %vm450, %v1436, 0.0
    %v1525 = vsel %vm451, %v1438, 0.0
    %v1526 = vsel %vm452, %v1440, 0.0
    %v1527 = vsel %vm453, %v1442, 0.0
    %v1528 = vsel %vm454, %v1444, 0.0
    %v1529 = vsel %vm455, %v1446, 0.0
    %v1530 = vsel %vm456, %v1448, 0.0
    %v1531 = vsel %vm457, %v1450, 0.0
    %v1532 = vsel %vm490, %v1470, 0.0
    %v1533 = vsel %vm491, %v1472, 0.0
    %v1534 = vsel %vm492, %v1474, 0.0
    %v1535 = vsel %vm493, %v1476, 0.0
    %v1536 = vsel %vm494, %v1478, 0.0
    %v1537 = vsel %vm495, %v1480, 0.0
    %v1538 = vsel %vm496, %v1482, 0.0
    %v1539 = vsel %vm497, %v1484, 0.0
    %v1540 = vsel %vm498, %v1486, 0.0
    %v1541 = vsel %vm499, %v1488, 0.0
    %v1542 = vsel %vm500, %v1490, 0.0
    %v1543 = vsel %vm501, %v1492, 0.0
    %v1544 = vsel %vm502, %v1494, 0.0
    %v1545 = vsel %vm503, %v1496, 0.0
    %v1546 = vsel %vm504, %v1498, 0.0
    %v1547 = vsel %vm505, %v1515, 0.0
    %v1548 = vld [vmem:[#allocation5] sm:$0xff]
    %v1549 = vld [vmem:[#allocation5 + $0x8] sm:$0xff]
    %v1550 = vld [vmem:[#allocation5 + $0x10] sm:$0xff]
    %v1551 = vld [vmem:[#allocation5 + $0x18] sm:$0xff]
    %v1552 = vld [vmem:[#allocation5 + $0x20] sm:$0xff]
    %v1553 = vld [vmem:[#allocation5 + $0x28] sm:$0xff]
    %v1554 = vld [vmem:[#allocation5 + $0x30] sm:$0xff]
    %v1555 = vld [vmem:[#allocation5 + $0x38] sm:$0xff]
    %v1556 = vld [vmem:[#allocation5 + $0x40] sm:$0xff]
    %v1557 = vld [vmem:[#allocation5 + $0x48] sm:$0xff]
    %v1558 = vld [vmem:[#allocation5 + $0x50] sm:$0xff]
    %v1559 = vld [vmem:[#allocation5 + $0x58] sm:$0xff]
    %v1560 = vld [vmem:[#allocation5 + $0x60] sm:$0xff]
    %v1561 = vld [vmem:[#allocation5 + $0x68] sm:$0xff]
    %v1562 = vld [vmem:[#allocation5 + $0x70] sm:$0xff]
    %v1563 = vld [vmem:[#allocation5 + $0x78] sm:$0xff]
    %v1564 = vld [vmem:[#allocation5 + $0x80] sm:$0xff]
    %v1565 = vld [vmem:[#allocation5 + $0x88] sm:$0xff]
    %v1566 = vld [vmem:[#allocation5 + $0x90] sm:$0xff]
    %v1567 = vld [vmem:[#allocation5 + $0x98] sm:$0xff]
    %v1568 = vld [vmem:[#allocation5 + $0xa0] sm:$0xff]
    %v1569 = vld [vmem:[#allocation5 + $0xa8] sm:$0xff]
    %v1570 = vld [vmem:[#allocation5 + $0xb0] sm:$0xff]
    %v1571 = vld [vmem:[#allocation5 + $0xb8] sm:$0xff]
    %v1572 = vld [vmem:[#allocation5 + $0xc0] sm:$0xff]
    %v1573 = vld [vmem:[#allocation5 + $0xc8] sm:$0xff]
    %v1574 = vld [vmem:[#allocation5 + $0xd0] sm:$0xff]
    %v1575 = vld [vmem:[#allocation5 + $0xd8] sm:$0xff]
    %v1576 = vld [vmem:[#allocation5 + $0xe0] sm:$0xff]
    %v1577 = vld [vmem:[#allocation5 + $0xe8] sm:$0xff]
    %v1578 = vld [vmem:[#allocation5 + $0xf0] sm:$0xff]
    %v1579 = vld [vmem:[#allocation5 + $0xf8] sm:$0xff]
    %v1580 = vld [vmem:[#allocation5 + $0x100] sm:$0xff]
    %v1581 = vld [vmem:[#allocation5 + $0x108] sm:$0xff]
    %v1582 = vld [vmem:[#allocation5 + $0x110] sm:$0xff]
    %v1583 = vld [vmem:[#allocation5 + $0x118] sm:$0xff]
    %v1584 = vld [vmem:[#allocation5 + $0x120] sm:$0xff]
    %v1585 = vld [vmem:[#allocation5 + $0x128] sm:$0xff]
    %v1586 = vld [vmem:[#allocation5 + $0x130] sm:$0xff]
    %v1587 = vld [vmem:[#allocation5 + $0x138] sm:$0xff]
    %v1588 = vld [vmem:[#allocation5 + $0x140] sm:$0xff]
    %v1589 = vld [vmem:[#allocation5 + $0x148] sm:$0xff]
    %v1590 = vld [vmem:[#allocation5 + $0x150] sm:$0xff]
    %v1591 = vld [vmem:[#allocation5 + $0x158] sm:$0xff]
    %v1592 = vld [vmem:[#allocation5 + $0x160] sm:$0xff]
    %v1593 = vld [vmem:[#allocation5 + $0x168] sm:$0xff]
    %v1594 = vld [vmem:[#allocation5 + $0x170] sm:$0xff]
    %v1595 = vld [vmem:[#allocation5 + $0x178] sm:$0xff]
    %v1596 = vld [vmem:[%s6] sm:$0x1]
    %v1598 = vlaneseq
    %v1599 = vshrl.u32 %v1598, 7
    %v1600 = vsub.s32 0, %v1599
    %v1601 = vrot.slane %v1596, %v1600
    %1603 = vmatprep.subr.mxu0 0.0
    %1604 = vmatpush1.msra.mxu0 %v1548
    %1605 = vmatprep.subr.mxu0 0.0
    %1606 = vmatpush1.msra.mxu0 %v1549
    %1607 = vmatprep.subr.mxu0 0.0
    %1608 = vmatpush1.msra.mxu0 %v1550
    %1609 = vmatprep.subr.mxu0 0.0
    %1610 = vmatpush1.msra.mxu0 %v1551
    %1611 = vmatprep.subr.mxu0 0.0
    %1612 = vmatpush1.msra.mxu0 %v1552
    %1613 = vmatprep.subr.mxu0 0.0
    %1614 = vmatpush1.msra.mxu0 %v1553
    %1615 = vmatprep.subr.mxu0 0.0
    %1616 = vmatpush1.msra.mxu0 %v1554
    %1617 = vmatprep.subr.mxu0 0.0
    %1618 = vmatpush1.msra.mxu0 %v1555
    %1619 = vmatprep.subr.mxu0 0.0
    %1620 = vmatpush1.msra.mxu0 %v1556
    %1621 = vmatprep.subr.mxu0 0.0
    %1622 = vmatpush1.msra.mxu0 %v1557
    %1623 = vmatprep.subr.mxu0 0.0
    %1624 = vmatpush1.msra.mxu0 %v1558
    %1625 = vmatprep.subr.mxu0 0.0
    %1626 = vmatpush1.msra.mxu0 %v1559
    %1627 = vmatprep.subr.mxu0 0.0
    %1628 = vmatpush1.msra.mxu0 %v1560
    %1629 = vmatprep.subr.mxu0 0.0
    %1630 = vmatpush1.msra.mxu0 %v1561
    %1631 = vmatprep.subr.mxu0 0.0
    %1632 = vmatpush1.msra.mxu0 %v1562
    %1633 = vmatprep.subr.mxu0 0.0
    %1634 = vmatpush1.msra.mxu0 %v1563
    %1635 = vmatprep.subr.mxu0 0.0
    %1636 = vmatpush1.msra.mxu0 %v1564
    %1637 = vmatprep.subr.mxu0 0.0
    %1638 = vmatpush1.msra.mxu0 %v1565
    %1639 = vmatprep.subr.mxu0 0.0
    %1640 = vmatpush1.msra.mxu0 %v1566
    %1641 = vmatprep.subr.mxu0 0.0
    %1642 = vmatpush1.msra.mxu0 %v1567
    %1643 = vmatprep.subr.mxu0 0.0
    %1644 = vmatpush1.msra.mxu0 %v1568
    %1645 = vmatprep.subr.mxu0 0.0
    %1646 = vmatpush1.msra.mxu0 %v1569
    %1647 = vmatprep.subr.mxu0 0.0
    %1648 = vmatpush1.msra.mxu0 %v1570
    %1649 = vmatprep.subr.mxu0 0.0
    %1650 = vmatpush1.msra.mxu0 %v1571
    %1651 = vmatprep.subr.mxu0 0.0
    %1652 = vmatpush1.msra.mxu0 %v1572
    %1653 = vmatprep.subr.mxu0 0.0
    %1654 = vmatpush1.msra.mxu0 %v1573
    %1655 = vmatprep.subr.mxu0 0.0
    %1656 = vmatpush1.msra.mxu0 %v1574
    %1657 = vmatprep.subr.mxu0 0.0
    %1658 = vmatpush1.msra.mxu0 %v1575
    %1659 = vmatprep.subr.mxu0 0.0
    %1660 = vmatpush1.msra.mxu0 %v1576
    %1661 = vmatprep.subr.mxu0 0.0
    %1662 = vmatpush1.msra.mxu0 %v1577
    %1663 = vmatprep.subr.mxu0 0.0
    %1664 = vmatpush1.msra.mxu0 %v1578
    %1665 = vmatprep.subr.mxu0 0.0
    %1666 = vmatpush1.msra.mxu0 %v1579
    %1667 = vmatprep.mubr.f32.mxu0 %v1388
    %1668 = vmatmul.mubr.f32.gmra.mrb[0].mxu0 %v1516
    %v1669 = vpop.f32.mrb[0].mxu0
    %v1670 = vadd.f32 %v1601, %v1669
    %v1671 = vpop.f32.mrb[0].mxu0
    %1672 = vmatprep.mubr.f32.mxu0 %v1389
    %1673 = vmatmul.mubr.f32.gmra.mrb[0].mxu0 %v1517
    %v1674 = vpop.f32.mrb[0].mxu0
    %v1675 = vadd.f32 %v1601, %v1674
    %v1676 = vpop.f32.mrb[0].mxu0
    %1677 = vmatprep.mubr.f32.mxu0 %v1390
    %1678 = vmatmul.mubr.f32.gmra.mrb[0].mxu0 %v1518
    %v1679 = vpop.f32.mrb[0].mxu0
    %v1680 = vadd.f32 %v1601, %v1679
    %v1681 = vpop.f32.mrb[0].mxu0
    %1682 = vmatprep.mubr.f32.mxu0 %v1391
    %1683 = vmatmul.mubr.f32.gmra.mrb[0].mxu0 %v1519
    %v1684 = vpop.f32.mrb[0].mxu0
    %v1685 = vadd.f32 %v1601, %v1684
    %v1686 = vpop.f32.mrb[0].mxu0
    %1687 = vmatprep.mubr.f32.mxu0 %v1392
    %1688 = vmatmul.mubr.f32.gmra.mrb[0].mxu0 %v1520
    %v1689 = vpop.f32.mrb[0].mxu0
    %v1690 = vadd.f32 %v1601, %v1689
    %v1691 = vpop.f32.mrb[0].mxu0
    %1692 = vmatprep.mubr.f32.mxu0 %v1393
    %1693 = vmatmul.mubr.f32.gmra.mrb[0].mxu0 %v1521
    %v1694 = vpop.f32.mrb[0].mxu0
    %v1695 = vadd.f32 %v1601, %v1694
    %v1696 = vpop.f32.mrb[0].mxu0
    %1697 = vmatprep.mubr.f32.mxu0 %v1394
    %1698 = vmatmul.mubr.f32.gmra.mrb[0].mxu0 %v1522
    %v1699 = vpop.f32.mrb[0].mxu0
    %v1700 = vadd.f32 %v1601, %v1699
    %v1701 = vpop.f32.mrb[0].mxu0
    %1702 = vmatprep.mubr.f32.mxu0 %v1395
    %1703 = vmatmul.mubr.f32.gmra.mrb[0].mxu0 %v1523
    %v1704 = vpop.f32.mrb[0].mxu0
    %v1705 = vadd.f32 %v1601, %v1704
    %v1706 = vpop.f32.mrb[0].mxu0
    %1707 = vmatprep.mubr.f32.mxu0 %v1396
    %1708 = vmatmul.mubr.f32.gmra.mrb[0].mxu0 %v1524
    %v1709 = vpop.f32.mrb[0].mxu0
    %v1710 = vadd.f32 %v1601, %v1709
    %v1711 = vpop.f32.mrb[0].mxu0
    %1712 = vmatprep.mubr.f32.mxu0 %v1397
    %1713 = vmatmul.mubr.f32.gmra.mrb[0].mxu0 %v1525
    %v1714 = vpop.f32.mrb[0].mxu0
    %v1715 = vadd.f32 %v1601, %v1714
    %v1716 = vpop.f32.mrb[0].mxu0
    %1717 = vmatprep.mubr.f32.mxu0 %v1398
    %1718 = vmatmul.mubr.f32.gmra.mrb[0].mxu0 %v1526
    %v1719 = vpop.f32.mrb[0].mxu0
    %v1720 = vadd.f32 %v1601, %v1719
    %v1721 = vpop.f32.mrb[0].mxu0
    %1722 = vmatprep.mubr.f32.mxu0 %v1399
    %1723 = vmatmul.mubr.f32.gmra.mrb[0].mxu0 %v1527
    %v1724 = vpop.f32.mrb[0].mxu0
    %v1725 = vadd.f32 %v1601, %v1724
    %v1726 = vpop.f32.mrb[0].mxu0
    %1727 = vmatprep.mubr.f32.mxu0 %v1400
    %1728 = vmatmul.mubr.f32.gmra.mrb[0].mxu0 %v1528
    %v1729 = vpop.f32.mrb[0].mxu0
    %v1730 = vadd.f32 %v1601, %v1729
    %v1731 = vpop.f32.mrb[0].mxu0
    %1732 = vmatprep.mubr.f32.mxu0 %v1401
    %1733 = vmatmul.mubr.f32.gmra.mrb[0].mxu0 %v1529
    %v1734 = vpop.f32.mrb[0].mxu0
    %v1735 = vadd.f32 %v1601, %v1734
    %v1736 = vpop.f32.mrb[0].mxu0
    %1737 = vmatprep.mubr.f32.mxu0 %v1402
    %1738 = vmatmul.mubr.f32.gmra.mrb[0].mxu0 %v1530
    %v1739 = vpop.f32.mrb[0].mxu0
    %v1740 = vadd.f32 %v1601, %v1739
    %v1741 = vpop.f32.mrb[0].mxu0
    %1742 = vmatprep.mubr.f32.mxu0 %v1403
    %1743 = vmatmul.mubr.f32.gmra.mrb[0].mxu0 %v1531
    %v1744 = vpop.f32.mrb[0].mxu0
    %v1745 = vadd.f32 %v1601, %v1744
    %v1746 = vpop.f32.mrb[0].mxu0
    %1747 = vdwg.mxu0
    %1748 = vmatprep.subr.mxu0 0.0
    %1749 = vmatpush1.msra.mxu0 %v1580
    %1750 = vmatprep.subr.mxu0 0.0
    %1751 = vmatpush1.msra.mxu0 %v1581
    %1752 = vmatprep.subr.mxu0 0.0
    %1753 = vmatpush1.msra.mxu0 %v1582
    %1754 = vmatprep.subr.mxu0 0.0
    %1755 = vmatpush1.msra.mxu0 %v1583
    %1756 = vmatprep.subr.mxu0 0.0
    %1757 = vmatpush1.msra.mxu0 %v1584
    %1758 = vmatprep.subr.mxu0 0.0
    %1759 = vmatpush1.msra.mxu0 %v1585
    %1760 = vmatprep.subr.mxu0 0.0
    %1761 = vmatpush1.msra.mxu0 %v1586
    %1762 = vmatprep.subr.mxu0 0.0
    %1763 = vmatpush1.msra.mxu0 %v1587
    %1764 = vmatprep.subr.mxu0 0.0
    %1765 = vmatpush1.msra.mxu0 %v1588
    %1766 = vmatprep.subr.mxu0 0.0
    %1767 = vmatpush1.msra.mxu0 %v1589
    %1768 = vmatprep.subr.mxu0 0.0
    %1769 = vmatpush1.msra.mxu0 %v1590
    %1770 = vmatprep.subr.mxu0 0.0
    %1771 = vmatpush1.msra.mxu0 %v1591
    %1772 = vmatprep.subr.mxu0 0.0
    %1773 = vmatpush1.msra.mxu0 %v1592
    %1774 = vmatprep.subr.mxu0 0.0
    %1775 = vmatpush1.msra.mxu0 %v1593
    %1776 = vmatprep.subr.mxu0 0.0
    %1777 = vmatpush1.msra.mxu0 %v1594
    %1778 = vmatprep.subr.mxu0 0.0
    %1779 = vmatpush1.msra.mxu0 %v1595
    %1780 = vmatprep.subr.mxu0 0.0
    %1781 = vmatpush1.msra.mxu0 0.0
    %1782 = vmatprep.subr.mxu0 0.0
    %1783 = vmatpush1.msra.mxu0 0.0
    %1784 = vmatprep.subr.mxu0 0.0
    %1785 = vmatpush1.msra.mxu0 0.0
    %1786 = vmatprep.subr.mxu0 0.0
    %1787 = vmatpush1.msra.mxu0 0.0
    %1788 = vmatprep.subr.mxu0 0.0
    %1789 = vmatpush1.msra.mxu0 0.0
    %1790 = vmatprep.subr.mxu0 0.0
    %1791 = vmatpush1.msra.mxu0 0.0
    %1792 = vmatprep.subr.mxu0 0.0
    %1793 = vmatpush1.msra.mxu0 0.0
    %1794 = vmatprep.subr.mxu0 0.0
    %1795 = vmatpush1.msra.mxu0 0.0
    %1796 = vmatprep.subr.mxu0 0.0
    %1797 = vmatpush1.msra.mxu0 0.0
    %1798 = vmatprep.subr.mxu0 0.0
    %1799 = vmatpush1.msra.mxu0 0.0
    %1800 = vmatprep.subr.mxu0 0.0
    %1801 = vmatpush1.msra.mxu0 0.0
    %1802 = vmatprep.subr.mxu0 0.0
    %1803 = vmatpush1.msra.mxu0 0.0
    %1804 = vmatprep.subr.mxu0 0.0
    %1805 = vmatpush1.msra.mxu0 0.0
    %1806 = vmatprep.subr.mxu0 0.0
    %1807 = vmatpush1.msra.mxu0 0.0
    %1808 = vmatprep.subr.mxu0 0.0
    %1809 = vmatpush1.msra.mxu0 0.0
    %1810 = vmatprep.subr.mxu0 0.0
    %1811 = vmatpush1.msra.mxu0 0.0
    %1812 = vmatprep.mubr.f32.mxu0 0.0
    %1813 = vmatmul.mubr.f32.gmra.mrb[0].mxu0 %v1532
    %v1814 = vpop.f32.mrb[0].mxu0
    %v1815 = vadd.f32 %v1670, %v1814
    %v1816 = vpop.f32.mrb[0].mxu0
    %1817 = vmatprep.mubr.f32.mxu0 0.0
    %1818 = vmatmul.mubr.f32.gmra.mrb[0].mxu0 %v1533
    %v1819 = vpop.f32.mrb[0].mxu0
    %v1820 = vadd.f32 %v1675, %v1819
    %v1821 = vpop.f32.mrb[0].mxu0
    %1822 = vmatprep.mubr.f32.mxu0 0.0
    %1823 = vmatmul.mubr.f32.gmra.mrb[0].mxu0 %v1534
    %v1824 = vpop.f32.mrb[0].mxu0
    %v1825 = vadd.f32 %v1680, %v1824
    %v1826 = vpop.f32.mrb[0].mxu0
    %1827 = vmatprep.mubr.f32.mxu0 0.0
    %1828 = vmatmul.mubr.f32.gmra.mrb[0].mxu0 %v1535
    %v1829 = vpop.f32.mrb[0].mxu0
    %v1830 = vadd.f32 %v1685, %v1829
    %v1831 = vpop.f32.mrb[0].mxu0
    %1832 = vmatprep.mubr.f32.mxu0 0.0
    %1833 = vmatmul.mubr.f32.gmra.mrb[0].mxu0 %v1536
    %v1834 = vpop.f32.mrb[0].mxu0
    %v1835 = vadd.f32 %v1690, %v1834
    %v1836 = vpop.f32.mrb[0].mxu0
    %1837 = vmatprep.mubr.f32.mxu0 0.0
    %1838 = vmatmul.mubr.f32.gmra.mrb[0].mxu0 %v1537
    %v1839 = vpop.f32.mrb[0].mxu0
    %v1840 = vadd.f32 %v1695, %v1839
    %v1841 = vpop.f32.mrb[0].mxu0
    %1842 = vmatprep.mubr.f32.mxu0 0.0
    %1843 = vmatmul.mubr.f32.gmra.mrb[0].mxu0 %v1538
    %v1844 = vpop.f32.mrb[0].mxu0
    %v1845 = vadd.f32 %v1700, %v1844
    %v1846 = vpop.f32.mrb[0].mxu0
    %1847 = vmatprep.mubr.f32.mxu0 0.0
    %1848 = vmatmul.mubr.f32.gmra.mrb[0].mxu0 %v1539
    %v1849 = vpop.f32.mrb[0].mxu0
    %v1850 = vadd.f32 %v1705, %v1849
    %v1851 = vpop.f32.mrb[0].mxu0
    %1852 = vmatprep.mubr.f32.mxu0 0.0
    %1853 = vmatmul.mubr.f32.gmra.mrb[0].mxu0 %v1540
    %v1854 = vpop.f32.mrb[0].mxu0
    %v1855 = vadd.f32 %v1710, %v1854
    %v1856 = vpop.f32.mrb[0].mxu0
    %1857 = vmatprep.mubr.f32.mxu0 0.0
    %1858 = vmatmul.mubr.f32.gmra.mrb[0].mxu0 %v1541
    %v1859 = vpop.f32.mrb[0].mxu0
    %v1860 = vadd.f32 %v1715, %v1859
    %v1861 = vpop.f32.mrb[0].mxu0
    %1862 = vmatprep.mubr.f32.mxu0 0.0
    %1863 = vmatmul.mubr.f32.gmra.mrb[0].mxu0 %v1542
    %v1864 = vpop.f32.mrb[0].mxu0
    %v1865 = vadd.f32 %v1720, %v1864
    %v1866 = vpop.f32.mrb[0].mxu0
    %1867 = vmatprep.mubr.f32.mxu0 0.0
    %1868 = vmatmul.mubr.f32.gmra.mrb[0].mxu0 %v1543
    %v1869 = vpop.f32.mrb[0].mxu0
    %v1870 = vadd.f32 %v1725, %v1869
    %v1871 = vpop.f32.mrb[0].mxu0
    %1872 = vmatprep.mubr.f32.mxu0 0.0
    %1873 = vmatmul.mubr.f32.gmra.mrb[0].mxu0 %v1544
    %v1874 = vpop.f32.mrb[0].mxu0
    %v1875 = vadd.f32 %v1730, %v1874
    %v1876 = vpop.f32.mrb[0].mxu0
    %1877 = vmatprep.mubr.f32.mxu0 0.0
    %1878 = vmatmul.mubr.f32.gmra.mrb[0].mxu0 %v1545
    %v1879 = vpop.f32.mrb[0].mxu0
    %v1880 = vadd.f32 %v1735, %v1879
    %v1881 = vpop.f32.mrb[0].mxu0
    %1882 = vmatprep.mubr.f32.mxu0 0.0
    %1883 = vmatmul.mubr.f32.gmra.mrb[0].mxu0 %v1546
    %v1884 = vpop.f32.mrb[0].mxu0
    %v1885 = vadd.f32 %v1740, %v1884
    %v1886 = vpop.f32.mrb[0].mxu0
    %1887 = vmatprep.mubr.f32.mxu0 0.0
    %1888 = vmatmul.mubr.f32.gmra.mrb[0].mxu0 %v1547
    %v1889 = vpop.f32.mrb[0].mxu0
    %v1890 = vadd.f32 %v1745, %v1889
    %v1891 = vpop.f32.mrb[0].mxu0
    %1892 = vdwg.mxu0
    %1893 = vst [vmem:[#allocation7] sm:$0xff] %v1815
    %1894 = vst [vmem:[#allocation7 + $0x8] sm:$0xff] %v1820
    %1895 = vst [vmem:[#allocation7 + $0x10] sm:$0xff] %v1825
    %1896 = vst [vmem:[#allocation7 + $0x18] sm:$0xff] %v1830
    %1897 = vst [vmem:[#allocation7 + $0x20] sm:$0xff] %v1835
    %1898 = vst [vmem:[#allocation7 + $0x28] sm:$0xff] %v1840
    %1899 = vst [vmem:[#allocation7 + $0x30] sm:$0xff] %v1845
    %1900 = vst [vmem:[#allocation7 + $0x38] sm:$0xff] %v1850
    %1901 = vst [vmem:[#allocation7 + $0x40] sm:$0xff] %v1855
    %1902 = vst [vmem:[#allocation7 + $0x48] sm:$0xff] %v1860
    %1903 = vst [vmem:[#allocation7 + $0x50] sm:$0xff] %v1865
    %1904 = vst [vmem:[#allocation7 + $0x58] sm:$0xff] %v1870
    %1905 = vst [vmem:[#allocation7 + $0x60] sm:$0xff] %v1875
    %1906 = vst [vmem:[#allocation7 + $0x68] sm:$0xff] %v1880
    %1907 = vst [vmem:[#allocation7 + $0x70] sm:$0xff] %v1885
    %1908 = vst [vmem:[#allocation7 + $0x78] sm:$0xff] %v1890
    // Predicated region
    $region38: #{tpu_custom_call.1} parent=1 // pred_check
      _
    $region39: #{tpu_custom_call.1} parent=1 // pred_check_branch
      %1910 = sbr.rel (0) target = $region41
    $region40: #{tpu_custom_call.1} parent=1 // pred_region
      %s1912 = ssub.s32 2048, 2048
      %1913 = vsyncadd [#allocation4], %s1912
      %s1914 = sshll.u32 [#allocation7], 4
      %s1915 = int_to_ptr.vmem [resolvable:$true] %s1914
      %1920 = dma.vmem_to_hbm [thread:$0]  %s1915, 2048, %s7, [#allocation4], 128, 128, 8
    $region41: #{tpu_custom_call.1} parent=1 // pred_fallthru
      _
    // Predicated region
    $region42: #{tpu_custom_call.1} parent=1 // pred_check
      _
    $region43: #{tpu_custom_call.1} parent=1 // pred_check_branch
      %1922 = sbr.rel (0) target = $region45
    $region44: #{tpu_custom_call.1} parent=1 // pred_region
      %1923 = dma.done [#allocation4], 2048
    $region45: #{tpu_custom_call.1} parent=1 // pred_fallthru
      _
    %1924 = vsyncpa [#allocation3], 1
    %1925 = vsyncpa [#allocation6], 1
    %1926 = vsyncpa [#allocation4], 1

</llo_original>
